<compile_context>
chip_gen: v6e
topology: v6e:2x2x1
jax: 0.10.0
libtpu: 0.0.40
codegen_flags: <defaults>
</compile_context>

<pallas_src>
import numpy as np
import jax
import jax.numpy as jnp
from jax.experimental import pallas as pl
from jax.experimental.pallas import tpu as pltpu


# ----------------------------------------------------------------------------
# Kernel factory: the whole recursive fusion in one kernel (levels unrolled).
# Per-view activations are (B*H, W*C) 2-D slabs, lane = w*C + c (channels fastest).
# ----------------------------------------------------------------------------
def _make_kernel(level_plan, L, B, H, WC, alpha_residual):
    num_levels = len(level_plan)
    BH = B * H

    def kernel(*refs):
        x_ref = refs[0]
        alpha_refs = refs[1:1 + num_levels]
        (m1_ref, m2_ref, m3_ref,
         b1_ref, b2_ref, b3_ref, pr_ref) = refs[1 + num_levels:8 + num_levels]
        out_ref = refs[8 + num_levels]

        def prelu(y, a):
            return jnp.where(y >= 0.0, y, a * y)

        def conv3x3(xin, m_ref, b_ref, top_mask, bot_mask, rows):
            # Vertical +-1 taps via sublane roll + per-image boundary masks.
            x_up = jnp.where(top_mask, 0.0, pltpu.roll(xin, 1, axis=0))         # row h-1
            x_dn = jnp.where(bot_mask, 0.0, pltpu.roll(xin, rows - 1, axis=0))  # row h+1
            xs = jnp.concatenate([x_up, xin, x_dn], axis=-1)                    # (rows, 3*2WC)
            return jnp.dot(xs, m_ref[...],
                           preferred_element_type=jnp.float32) + b_ref[...]

        a1 = pr_ref[0]
        a2 = pr_ref[1]
        a3 = pr_ref[2]

        # Current per-view hidden states, each (B*H, WC).
        x_list = [x_ref[v] for v in range(L)]

        for lvl, (nviews, parity, half) in enumerate(level_plan):
            rows = half * BH
            if half > 1:
                alice = jnp.concatenate([x_list[j] for j in range(half)], axis=0)
                bob = jnp.concatenate(
                    [x_list[nviews - parity - 1 - j] for j in range(half)], axis=0)
            else:
                alice = x_list[0]
                bob = x_list[nviews - parity - 1]
            x_in = jnp.concatenate([alice, bob], axis=-1)          # (rows, 2*WC)

            ridx = jax.lax.broadcasted_iota(jnp.int32, (rows, 2 * WC), 0)
            if H & (H - 1) == 0:
                rh = jnp.bitwise_and(ridx, H - 1)                  # row within image
            else:
                rh = jax.lax.rem(ridx, H)
            top_mask = rh == 0
            bot_mask = rh == (H - 1)

            # ResidualBlock(2C): conv -> PReLU -> conv -> PReLU, then skip.
            h1 = prelu(conv3x3(x_in, m1_ref, b1_ref, top_mask, bot_mask, rows), a1)
            h2 = prelu(conv3x3(h1, m2_ref, b2_ref, top_mask, bot_mask, rows), a2)
            rb = x_in + h2
            # fuse conv 2C -> C, PReLU
            y = prelu(conv3x3(rb, m3_ref, b3_ref, top_mask, bot_mask, rows), a3)

            if alpha_residual:
                y = alice + alpha_refs[lvl][...] * y               # (rows,1) broadcast
            x_list = [y[j * BH:(j + 1) * BH, :] for j in range(half)]

        # Final mean over the remaining view axis (size 1 after full recursion).
        acc = x_list[0]
        for v in x_list[1:]:
            acc = acc + v
        if len(x_list) > 1:
            acc = acc * (1.0 / len(x_list))
        out_ref[...] = acc

    return kernel


def _level_plan(L):
    plan = []
    nviews, parity, half = L, L % 2, L // 2
    while half > 0:
        plan.append((nviews, parity, half))
        nviews, parity, half = half, half % 2, half // 2
    return plan


# ----------------------------------------------------------------------------
# Wrapper: layout plumbing + single pallas_call
# ----------------------------------------------------------------------------
def recuversive_net(x_nlchw, alphas, params, alpha_residual=True):
    """x_nlchw: (B, L, C, H, W), alphas: (B, L, 1, 1, 1).  Returns (B, C, H, W)."""
    M1s, b1p, M2s, b2p, M3s, b3p, pr = params
    B, L, C, H, W = x_nlchw.shape
    WC = W * C
    BH = B * H
    plan = _level_plan(L)

    # (L, B*H, W*C): rows = b*H + h, lanes = w*C + c
    x_p = jnp.transpose(x_nlchw, (1, 0, 3, 4, 2)).reshape(L, BH, WC).astype(jnp.float32)

    # Per-level alpha columns (pure indexing glue), row order = (pair j, batch b, row h).
    a2d = alphas.reshape(B, L).astype(jnp.float32)
    alpha_cols = []
    for (nv, par, hf) in plan:
        a_bob = jnp.flip(a2d[:, hf:nv - par], axis=1)              # (B, hf)
        col = jnp.transpose(a_bob, (1, 0)).reshape(hf * B, 1, 1)
        col = jnp.broadcast_to(col, (hf * B, H, 1)).reshape(hf * B * H, 1)
        alpha_cols.append(col)

    kernel = _make_kernel(plan, L, B, H, WC, alpha_residual)

    def vmem_spec(shape):
        return pl.BlockSpec(shape, lambda i: (0,) * len(shape))

    in_specs = [vmem_spec(x_p.shape)]
    in_specs += [vmem_spec(c.shape) for c in alpha_cols]
    in_specs += [vmem_spec(M1s.shape), vmem_spec(M2s.shape), vmem_spec(M3s.shape),
                 vmem_spec(b1p.shape), vmem_spec(b2p.shape), vmem_spec(b3p.shape),
                 pl.BlockSpec(memory_space=pltpu.MemorySpace.SMEM)]

    out = pl.pallas_call(
        kernel,
        out_shape=jax.ShapeDtypeStruct((BH, WC), jnp.float32),
        grid_spec=pltpu.PrefetchScalarGridSpec(
            num_scalar_prefetch=0,
            grid=(1,),
            in_specs=in_specs,
            out_specs=pl.BlockSpec((BH, WC), lambda i: (0, 0)),
        ),
        compiler_params=pltpu.CompilerParams(
            dimension_semantics=("arbitrary",)),
    )(x_p, *alpha_cols, M1s, M2s, M3s, b1p, b2p, b3p, pr)

    out = out.reshape(B, H, W, C)
    return jnp.transpose(out, (0, 3, 1, 2))


# ----------------------------------------------------------------------------
# Deterministic parameter init + packing into the stacked-K matmul form
# ----------------------------------------------------------------------------
def init_conv(key, c_in, c_out, k=3):
    fan_in = c_in * k * k
    bound = 1.0 / np.sqrt(fan_in)
    kw, kb = jax.random.split(key)
    w = jax.random.uniform(kw, (k, k, c_in, c_out), jnp.float32, -bound, bound)  # HWIO
    b = jax.random.uniform(kb, (c_out,), jnp.float32, -bound, bound)
    return w, b


def pack_conv(w_hwio, b, W, in_lane, out_lane, in_width, out_width):
    """Fold a 3x3 SAME conv into a stacked matmul weight.

    Returns Ms of shape (3*in_width, out_width) with row blocks ordered
    [ky=-1; ky=0; ky=+1] to match the kernel's concat([x_up, x, x_dn]) operand,
    plus a (1, out_width) bias row.  in_lane/out_lane map (column w, channel) -> lane.
    """
    w = np.asarray(w_hwio)
    b = np.asarray(b)
    _, _, c_in, c_out = w.shape
    M = np.zeros((3, in_width, out_width), np.float32)
    for kyi in range(3):                      # ky = kyi - 1  (input row = h + ky)
        for kx in (-1, 0, 1):
            for wo in range(W):
                wi = wo + kx
                if 0 <= wi < W:
                    for ci in range(c_in):
                        for co in range(c_out):
                            M[kyi, in_lane(wi, ci), out_lane(wo, co)] = w[kyi, kx + 1, ci, co]
    bt = np.zeros((1, out_width), np.float32)
    for co in range(c_out):
        for wo in range(W):
            bt[0, out_lane(wo, co)] = b[co]
    return jnp.asarray(M.reshape(3 * in_width, out_width)), jnp.asarray(bt)


# ----------------------------------------------------------------------------
# Pure-JAX reference (lax.conv) for validation
# ----------------------------------------------------------------------------
def _conv_ref(x, w, b):
    return jax.lax.conv_general_dilated(
        x, w, window_strides=(1, 1), padding="SAME",
        dimension_numbers=("NHWC", "HWIO", "NHWC"),
        precision=jax.lax.Precision.HIGHEST) + b


def _fuse_ref(ab, weights):
    (w1, b1, w2, b2, w3, b3, a) = weights
    prelu = lambda y, s: jnp.where(y >= 0.0, y, s * y)
    h = prelu(_conv_ref(ab, w1, b1), a[0])
    h = prelu(_conv_ref(h, w2, b2), a[1])
    rb = ab + h
    return prelu(_conv_ref(rb, w3, b3), a[2])


def recuversive_net_ref(x_nlchw, alphas, weights, alpha_residual=True):
    B, L, C, H, W = x_nlchw.shape
    x = jnp.transpose(x_nlchw, (0, 1, 3, 4, 2))
    nviews, parity, half = L, L % 2, L // 2
    while half > 0:
        alice = x[:, :half]
        bob = jnp.flip(x[:, half:nviews - parity], axis=1)
        ab = jnp.concatenate([alice, bob], axis=-1).reshape(B * half, H, W, 2 * C)
        y = _fuse_ref(ab, weights).reshape(B, half, H, W, C)
        if alpha_residual:
            a_bob = jnp.flip(alphas[:, half:nviews - parity], axis=1)
            y = alice + a_bob * y
            alphas = alphas[:, :half]
        x = y
        nviews, parity, half = half, half % 2, half // 2
    out = jnp.mean(x, axis=1)
    return jnp.transpose(out, (0, 3, 1, 2))


# ----------------------------------------------------------------------------
if __name__ == "__main__":
    # config: in_channels=4, kernel_size=3, alpha_residual=True
    # (num_layers is unused in this module's forward)
    B, L, C, H, W = 2, 6, 4, 16, 16

    key = jax.random.PRNGKey(0)
    kx, ka, k1, k2, k3 = jax.random.split(key, 5)

    x = jax.random.normal(kx, (B, L, C, H, W), jnp.float32)            # hidden states
    alphas = (jax.random.uniform(ka, (B, L, 1, 1, 1)) > 0.3).astype(jnp.float32)

    w1, b1 = init_conv(k1, 2 * C, 2 * C)      # ResidualBlock conv1
    w2, b2 = init_conv(k2, 2 * C, 2 * C)      # ResidualBlock conv2
    w3, b3 = init_conv(k3, 2 * C, C)          # fuse conv 2C -> C
    prelu_slopes = jnp.array([0.25, 0.25, 0.25], jnp.float32)          # PReLU defaults

    # Channel->lane maps.  Per-view activations use lane = w*C + c.  The
    # concatenated alice|bob input uses the "block" layout
    #   [alice lanes (W*C) | bob lanes (W*C)]
    # which is exactly what the in-kernel lane concat produces.
    def lane_2c(wi, cc):
        return wi * C + cc if cc < C else W * C + wi * C + (cc - C)

    def lane_c(wo, co):
        return wo * C + co

    M1s, b1p = pack_conv(w1, b1, W, lane_2c, lane_2c, 2 * W * C, 2 * W * C)
    M2s, b2p = pack_conv(w2, b2, W, lane_2c, lane_2c, 2 * W * C, 2 * W * C)
    M3s, b3p = pack_conv(w3, b3, W, lane_2c, lane_c, 2 * W * C, W * C)
    params = (M1s, b1p, M2s, b2p, M3s, b3p, prelu_slopes)

    out = recuversive_net(x, alphas, params, alpha_residual=True)
    out = jax.block_until_ready(out)
    assert out.shape == (B, C, H, W), out.shape

    ref = recuversive_net_ref(x, alphas, (w1, b1, w2, b2, w3, b3, prelu_slopes),
                              alpha_residual=True)
    rel = float(jnp.linalg.norm(out - ref) / (jnp.linalg.norm(ref) + 1e-8))
    assert rel < 2e-2, f"relative error too large: {rel}"

    print("KERNEL_OK")
</pallas_src>

<mosaic_0001>
module attributes {stable_mosaic.version = 11 : i64} {
  func.func @kernel(%arg0: i32, %arg1: memref<6x32x64xf32, #tpu.memory_space<vmem>>, %arg2: memref<96x1xf32, #tpu.memory_space<vmem>>, %arg3: memref<32x1xf32, #tpu.memory_space<vmem>>, %arg4: memref<384x128xf32, #tpu.memory_space<vmem>>, %arg5: memref<384x128xf32, #tpu.memory_space<vmem>>, %arg6: memref<384x64xf32, #tpu.memory_space<vmem>>, %arg7: memref<1x128xf32, #tpu.memory_space<vmem>>, %arg8: memref<1x128xf32, #tpu.memory_space<vmem>>, %arg9: memref<1x64xf32, #tpu.memory_space<vmem>>, %arg10: memref<3xf32, #tpu.memory_space<smem>>, %arg11: memref<32x64xf32, #tpu.memory_space<vmem>>) attributes {dimension_semantics = [#tpu.dimension_semantics<arbitrary>], iteration_bounds = array<i64: 1>, scalar_prefetch = 0 : i64, scratch_operands = 0 : i64, tpu.core_type = #tpu.core_type<tc>, window_params = [{pipeline_mode = #tpu.pipeline_mode<synchronous>, transform_indices = @transform_0, window_bounds = array<i64: 6, 32, 64>}, {pipeline_mode = #tpu.pipeline_mode<synchronous>, transform_indices = @transform_1, window_bounds = array<i64: 96, 1>}, {pipeline_mode = #tpu.pipeline_mode<synchronous>, transform_indices = @transform_2, window_bounds = array<i64: 32, 1>}, {pipeline_mode = #tpu.pipeline_mode<synchronous>, transform_indices = @transform_3, window_bounds = array<i64: 384, 128>}, {pipeline_mode = #tpu.pipeline_mode<synchronous>, transform_indices = @transform_4, window_bounds = array<i64: 384, 128>}, {pipeline_mode = #tpu.pipeline_mode<synchronous>, transform_indices = @transform_5, window_bounds = array<i64: 384, 64>}, {pipeline_mode = #tpu.pipeline_mode<synchronous>, transform_indices = @transform_6, window_bounds = array<i64: 1, 128>}, {pipeline_mode = #tpu.pipeline_mode<synchronous>, transform_indices = @transform_7, window_bounds = array<i64: 1, 128>}, {pipeline_mode = #tpu.pipeline_mode<synchronous>, transform_indices = @transform_8, window_bounds = array<i64: 1, 64>}, {transform_indices = @transform_9, window_bounds = array<i64: 3>}, {pipeline_mode = #tpu.pipeline_mode<synchronous>, transform_indices = @transform_10, window_bounds = array<i64: 32, 64>}]} {
    %c0 = arith.constant 0 : index
    %0 = memref.load %arg10[%c0] : memref<3xf32, #tpu.memory_space<smem>>
    %c1 = arith.constant 1 : index
    %1 = memref.load %arg10[%c1] : memref<3xf32, #tpu.memory_space<smem>>
    %c2 = arith.constant 2 : index
    %2 = memref.load %arg10[%c2] : memref<3xf32, #tpu.memory_space<smem>>
    %c0_0 = arith.constant 0 : index
    %c0_1 = arith.constant 0 : index
    %c0_2 = arith.constant 0 : index
    %3 = vector.load %arg1[%c0_0, %c0_1, %c0_2] : memref<6x32x64xf32, #tpu.memory_space<vmem>>, vector<1x32x64xf32>
    %4 = vector.shape_cast %3 : vector<1x32x64xf32> to vector<32x64xf32>
    %c1_3 = arith.constant 1 : index
    %c0_4 = arith.constant 0 : index
    %c0_5 = arith.constant 0 : index
    %5 = vector.load %arg1[%c1_3, %c0_4, %c0_5] : memref<6x32x64xf32, #tpu.memory_space<vmem>>, vector<1x32x64xf32>
    %6 = vector.shape_cast %5 : vector<1x32x64xf32> to vector<32x64xf32>
    %c2_6 = arith.constant 2 : index
    %c0_7 = arith.constant 0 : index
    %c0_8 = arith.constant 0 : index
    %7 = vector.load %arg1[%c2_6, %c0_7, %c0_8] : memref<6x32x64xf32, #tpu.memory_space<vmem>>, vector<1x32x64xf32>
    %8 = vector.shape_cast %7 : vector<1x32x64xf32> to vector<32x64xf32>
    %c3 = arith.constant 3 : index
    %c0_9 = arith.constant 0 : index
    %c0_10 = arith.constant 0 : index
    %9 = vector.load %arg1[%c3, %c0_9, %c0_10] : memref<6x32x64xf32, #tpu.memory_space<vmem>>, vector<1x32x64xf32>
    %10 = vector.shape_cast %9 : vector<1x32x64xf32> to vector<32x64xf32>
    %c4 = arith.constant 4 : index
    %c0_11 = arith.constant 0 : index
    %c0_12 = arith.constant 0 : index
    %11 = vector.load %arg1[%c4, %c0_11, %c0_12] : memref<6x32x64xf32, #tpu.memory_space<vmem>>, vector<1x32x64xf32>
    %12 = vector.shape_cast %11 : vector<1x32x64xf32> to vector<32x64xf32>
    %c5 = arith.constant 5 : index
    %c0_13 = arith.constant 0 : index
    %c0_14 = arith.constant 0 : index
    %13 = vector.load %arg1[%c5, %c0_13, %c0_14] : memref<6x32x64xf32, #tpu.memory_space<vmem>>, vector<1x32x64xf32>
    %14 = vector.shape_cast %13 : vector<1x32x64xf32> to vector<32x64xf32>
    %15 = tpu.concatenate %4, %6, %8 in 0 : vector<32x64xf32>, vector<32x64xf32>, vector<32x64xf32> -> vector<96x64xf32>
    %16 = tpu.concatenate %14, %12, %10 in 0 : vector<32x64xf32>, vector<32x64xf32>, vector<32x64xf32> -> vector<96x64xf32>
    %17 = tpu.concatenate %15, %16 in 1 : vector<96x64xf32>, vector<96x64xf32> -> vector<96x128xf32>
    %18 = tpu.iota {dimensions = array<i32: 0>} : vector<96x128xi32>
    %c15_i32 = arith.constant 15 : i32
    %19 = vector.broadcast %c15_i32 : i32 to vector<96x128xi32>
    %20 = arith.andi %18, %19 : vector<96x128xi32>
    %c0_i32 = arith.constant 0 : i32
    %21 = vector.broadcast %c0_i32 : i32 to vector<96x128xi32>
    %22 = arith.cmpi eq, %20, %21 : vector<96x128xi32>
    %c15_i32_15 = arith.constant 15 : i32
    %23 = vector.broadcast %c15_i32_15 : i32 to vector<96x128xi32>
    %24 = arith.cmpi eq, %20, %23 : vector<96x128xi32>
    %c1_i32 = arith.constant 1 : i32
    %25 = tpu.dynamic_rotate %17 by %c1_i32 dim 0 : vector<96x128xf32>, i32 -> vector<96x128xf32>
    %cst = arith.constant 0.000000e+00 : f32
    %26 = vector.broadcast %cst : f32 to vector<96x128xf32>
    %27 = arith.select %22, %26, %25 : vector<96x128xi1>, vector<96x128xf32>
    %c95_i32 = arith.constant 95 : i32
    %28 = tpu.dynamic_rotate %17 by %c95_i32 dim 0 : vector<96x128xf32>, i32 -> vector<96x128xf32>
    %cst_16 = arith.constant 0.000000e+00 : f32
    %29 = vector.broadcast %cst_16 : f32 to vector<96x128xf32>
    %30 = arith.select %24, %29, %28 : vector<96x128xi1>, vector<96x128xf32>
    %31 = tpu.concatenate %27, %17, %30 in 1 : vector<96x128xf32>, vector<96x128xf32>, vector<96x128xf32> -> vector<96x384xf32>
    %c0_17 = arith.constant 0 : index
    %c0_18 = arith.constant 0 : index
    %32 = vector.load %arg4[%c0_17, %c0_18] : memref<384x128xf32, #tpu.memory_space<vmem>>, vector<384x128xf32>
    %cst_19 = arith.constant dense<0.000000e+00> : vector<96x128xf32>
    %33 = tpu.matmul %31, %32, %cst_19 {dimension_numbers = #tpu.dot_dimension_numbers<[1], [0], [0], [1], [0, 0, 1, 1], [], []>} : vector<96x384xf32>, vector<384x128xf32>, vector<96x128xf32> -> vector<96x128xf32>
    %c0_20 = arith.constant 0 : index
    %c0_21 = arith.constant 0 : index
    %34 = vector.load %arg7[%c0_20, %c0_21] : memref<1x128xf32, #tpu.memory_space<vmem>>, vector<1x128xf32>
    %35 = vector.broadcast %34 : vector<1x128xf32> to vector<96x128xf32>
    %36 = arith.addf %33, %35 : vector<96x128xf32>
    %cst_22 = arith.constant 0.000000e+00 : f32
    %37 = vector.broadcast %cst_22 : f32 to vector<96x128xf32>
    %38 = arith.cmpf oge, %36, %37 : vector<96x128xf32>
    %39 = vector.broadcast %0 : f32 to vector<96x128xf32>
    %40 = arith.mulf %39, %36 : vector<96x128xf32>
    %41 = arith.select %38, %36, %40 : vector<96x128xi1>, vector<96x128xf32>
    %c1_i32_23 = arith.constant 1 : i32
    %42 = tpu.dynamic_rotate %41 by %c1_i32_23 dim 0 : vector<96x128xf32>, i32 -> vector<96x128xf32>
    %cst_24 = arith.constant 0.000000e+00 : f32
    %43 = vector.broadcast %cst_24 : f32 to vector<96x128xf32>
    %44 = arith.select %22, %43, %42 : vector<96x128xi1>, vector<96x128xf32>
    %c95_i32_25 = arith.constant 95 : i32
    %45 = tpu.dynamic_rotate %41 by %c95_i32_25 dim 0 : vector<96x128xf32>, i32 -> vector<96x128xf32>
    %cst_26 = arith.constant 0.000000e+00 : f32
    %46 = vector.broadcast %cst_26 : f32 to vector<96x128xf32>
    %47 = arith.select %24, %46, %45 : vector<96x128xi1>, vector<96x128xf32>
    %48 = tpu.concatenate %44, %41, %47 in 1 : vector<96x128xf32>, vector<96x128xf32>, vector<96x128xf32> -> vector<96x384xf32>
    %c0_27 = arith.constant 0 : index
    %c0_28 = arith.constant 0 : index
    %49 = vector.load %arg5[%c0_27, %c0_28] : memref<384x128xf32, #tpu.memory_space<vmem>>, vector<384x128xf32>
    %cst_29 = arith.constant dense<0.000000e+00> : vector<96x128xf32>
    %50 = tpu.matmul %48, %49, %cst_29 {dimension_numbers = #tpu.dot_dimension_numbers<[1], [0], [0], [1], [0, 0, 1, 1], [], []>} : vector<96x384xf32>, vector<384x128xf32>, vector<96x128xf32> -> vector<96x128xf32>
    %c0_30 = arith.constant 0 : index
    %c0_31 = arith.constant 0 : index
    %51 = vector.load %arg8[%c0_30, %c0_31] : memref<1x128xf32, #tpu.memory_space<vmem>>, vector<1x128xf32>
    %52 = vector.broadcast %51 : vector<1x128xf32> to vector<96x128xf32>
    %53 = arith.addf %50, %52 : vector<96x128xf32>
    %cst_32 = arith.constant 0.000000e+00 : f32
    %54 = vector.broadcast %cst_32 : f32 to vector<96x128xf32>
    %55 = arith.cmpf oge, %53, %54 : vector<96x128xf32>
    %56 = vector.broadcast %1 : f32 to vector<96x128xf32>
    %57 = arith.mulf %56, %53 : vector<96x128xf32>
    %58 = arith.select %55, %53, %57 : vector<96x128xi1>, vector<96x128xf32>
    %59 = arith.addf %17, %58 : vector<96x128xf32>
    %c1_i32_33 = arith.constant 1 : i32
    %60 = tpu.dynamic_rotate %59 by %c1_i32_33 dim 0 : vector<96x128xf32>, i32 -> vector<96x128xf32>
    %cst_34 = arith.constant 0.000000e+00 : f32
    %61 = vector.broadcast %cst_34 : f32 to vector<96x128xf32>
    %62 = arith.select %22, %61, %60 : vector<96x128xi1>, vector<96x128xf32>
    %c95_i32_35 = arith.constant 95 : i32
    %63 = tpu.dynamic_rotate %59 by %c95_i32_35 dim 0 : vector<96x128xf32>, i32 -> vector<96x128xf32>
    %cst_36 = arith.constant 0.000000e+00 : f32
    %64 = vector.broadcast %cst_36 : f32 to vector<96x128xf32>
    %65 = arith.select %24, %64, %63 : vector<96x128xi1>, vector<96x128xf32>
    %66 = tpu.concatenate %62, %59, %65 in 1 : vector<96x128xf32>, vector<96x128xf32>, vector<96x128xf32> -> vector<96x384xf32>
    %c0_37 = arith.constant 0 : index
    %c0_38 = arith.constant 0 : index
    %67 = vector.load %arg6[%c0_37, %c0_38] : memref<384x64xf32, #tpu.memory_space<vmem>>, vector<384x64xf32>
    %cst_39 = arith.constant dense<0.000000e+00> : vector<96x64xf32>
    %68 = tpu.matmul %66, %67, %cst_39 {dimension_numbers = #tpu.dot_dimension_numbers<[1], [0], [0], [1], [0, 0, 1, 1], [], []>} : vector<96x384xf32>, vector<384x64xf32>, vector<96x64xf32> -> vector<96x64xf32>
    %c0_40 = arith.constant 0 : index
    %c0_41 = arith.constant 0 : index
    %69 = vector.load %arg9[%c0_40, %c0_41] : memref<1x64xf32, #tpu.memory_space<vmem>>, vector<1x64xf32>
    %70 = vector.broadcast %69 : vector<1x64xf32> to vector<96x64xf32>
    %71 = arith.addf %68, %70 : vector<96x64xf32>
    %cst_42 = arith.constant 0.000000e+00 : f32
    %72 = vector.broadcast %cst_42 : f32 to vector<96x64xf32>
    %73 = arith.cmpf oge, %71, %72 : vector<96x64xf32>
    %74 = vector.broadcast %2 : f32 to vector<96x64xf32>
    %75 = arith.mulf %74, %71 : vector<96x64xf32>
    %76 = arith.select %73, %71, %75 : vector<96x64xi1>, vector<96x64xf32>
    %c0_43 = arith.constant 0 : index
    %c0_44 = arith.constant 0 : index
    %77 = vector.load %arg2[%c0_43, %c0_44] : memref<96x1xf32, #tpu.memory_space<vmem>>, vector<96x1xf32>
    %78 = vector.broadcast %77 : vector<96x1xf32> to vector<96x64xf32>
    %79 = arith.mulf %78, %76 : vector<96x64xf32>
    %80 = arith.addf %15, %79 : vector<96x64xf32>
    %81 = vector.extract_strided_slice %80 {offsets = [0, 0], sizes = [32, 64], strides = [1, 1]} : vector<96x64xf32> to vector<32x64xf32>
    %82 = vector.extract_strided_slice %80 {offsets = [32, 0], sizes = [32, 64], strides = [1, 1]} : vector<96x64xf32> to vector<32x64xf32>
    %83 = tpu.concatenate %81, %82 in 1 : vector<32x64xf32>, vector<32x64xf32> -> vector<32x128xf32>
    %84 = tpu.iota {dimensions = array<i32: 0>} : vector<32x128xi32>
    %c15_i32_45 = arith.constant 15 : i32
    %85 = vector.broadcast %c15_i32_45 : i32 to vector<32x128xi32>
    %86 = arith.andi %84, %85 : vector<32x128xi32>
    %c0_i32_46 = arith.constant 0 : i32
    %87 = vector.broadcast %c0_i32_46 : i32 to vector<32x128xi32>
    %88 = arith.cmpi eq, %86, %87 : vector<32x128xi32>
    %c15_i32_47 = arith.constant 15 : i32
    %89 = vector.broadcast %c15_i32_47 : i32 to vector<32x128xi32>
    %90 = arith.cmpi eq, %86, %89 : vector<32x128xi32>
    %c1_i32_48 = arith.constant 1 : i32
    %91 = tpu.dynamic_rotate %83 by %c1_i32_48 dim 0 : vector<32x128xf32>, i32 -> vector<32x128xf32>
    %cst_49 = arith.constant 0.000000e+00 : f32
    %92 = vector.broadcast %cst_49 : f32 to vector<32x128xf32>
    %93 = arith.select %88, %92, %91 : vector<32x128xi1>, vector<32x128xf32>
    %c31_i32 = arith.constant 31 : i32
    %94 = tpu.dynamic_rotate %83 by %c31_i32 dim 0 : vector<32x128xf32>, i32 -> vector<32x128xf32>
    %cst_50 = arith.constant 0.000000e+00 : f32
    %95 = vector.broadcast %cst_50 : f32 to vector<32x128xf32>
    %96 = arith.select %90, %95, %94 : vector<32x128xi1>, vector<32x128xf32>
    %97 = tpu.concatenate %93, %83, %96 in 1 : vector<32x128xf32>, vector<32x128xf32>, vector<32x128xf32> -> vector<32x384xf32>
    %c0_51 = arith.constant 0 : index
    %c0_52 = arith.constant 0 : index
    %98 = vector.load %arg4[%c0_51, %c0_52] : memref<384x128xf32, #tpu.memory_space<vmem>>, vector<384x128xf32>
    %cst_53 = arith.constant dense<0.000000e+00> : vector<32x128xf32>
    %99 = tpu.matmul %97, %98, %cst_53 {dimension_numbers = #tpu.dot_dimension_numbers<[1], [0], [0], [1], [0, 0, 1, 1], [], []>} : vector<32x384xf32>, vector<384x128xf32>, vector<32x128xf32> -> vector<32x128xf32>
    %c0_54 = arith.constant 0 : index
    %c0_55 = arith.constant 0 : index
    %100 = vector.load %arg7[%c0_54, %c0_55] : memref<1x128xf32, #tpu.memory_space<vmem>>, vector<1x128xf32>
    %101 = vector.broadcast %100 : vector<1x128xf32> to vector<32x128xf32>
    %102 = arith.addf %99, %101 : vector<32x128xf32>
    %cst_56 = arith.constant 0.000000e+00 : f32
    %103 = vector.broadcast %cst_56 : f32 to vector<32x128xf32>
    %104 = arith.cmpf oge, %102, %103 : vector<32x128xf32>
    %105 = vector.broadcast %0 : f32 to vector<32x128xf32>
    %106 = arith.mulf %105, %102 : vector<32x128xf32>
    %107 = arith.select %104, %102, %106 : vector<32x128xi1>, vector<32x128xf32>
    %c1_i32_57 = arith.constant 1 : i32
    %108 = tpu.dynamic_rotate %107 by %c1_i32_57 dim 0 : vector<32x128xf32>, i32 -> vector<32x128xf32>
    %cst_58 = arith.constant 0.000000e+00 : f32
    %109 = vector.broadcast %cst_58 : f32 to vector<32x128xf32>
    %110 = arith.select %88, %109, %108 : vector<32x128xi1>, vector<32x128xf32>
    %c31_i32_59 = arith.constant 31 : i32
    %111 = tpu.dynamic_rotate %107 by %c31_i32_59 dim 0 : vector<32x128xf32>, i32 -> vector<32x128xf32>
    %cst_60 = arith.constant 0.000000e+00 : f32
    %112 = vector.broadcast %cst_60 : f32 to vector<32x128xf32>
    %113 = arith.select %90, %112, %111 : vector<32x128xi1>, vector<32x128xf32>
    %114 = tpu.concatenate %110, %107, %113 in 1 : vector<32x128xf32>, vector<32x128xf32>, vector<32x128xf32> -> vector<32x384xf32>
    %c0_61 = arith.constant 0 : index
    %c0_62 = arith.constant 0 : index
    %115 = vector.load %arg5[%c0_61, %c0_62] : memref<384x128xf32, #tpu.memory_space<vmem>>, vector<384x128xf32>
    %cst_63 = arith.constant dense<0.000000e+00> : vector<32x128xf32>
    %116 = tpu.matmul %114, %115, %cst_63 {dimension_numbers = #tpu.dot_dimension_numbers<[1], [0], [0], [1], [0, 0, 1, 1], [], []>} : vector<32x384xf32>, vector<384x128xf32>, vector<32x128xf32> -> vector<32x128xf32>
    %c0_64 = arith.constant 0 : index
    %c0_65 = arith.constant 0 : index
    %117 = vector.load %arg8[%c0_64, %c0_65] : memref<1x128xf32, #tpu.memory_space<vmem>>, vector<1x128xf32>
    %118 = vector.broadcast %117 : vector<1x128xf32> to vector<32x128xf32>
    %119 = arith.addf %116, %118 : vector<32x128xf32>
    %cst_66 = arith.constant 0.000000e+00 : f32
    %120 = vector.broadcast %cst_66 : f32 to vector<32x128xf32>
    %121 = arith.cmpf oge, %119, %120 : vector<32x128xf32>
    %122 = vector.broadcast %1 : f32 to vector<32x128xf32>
    %123 = arith.mulf %122, %119 : vector<32x128xf32>
    %124 = arith.select %121, %119, %123 : vector<32x128xi1>, vector<32x128xf32>
    %125 = arith.addf %83, %124 : vector<32x128xf32>
    %c1_i32_67 = arith.constant 1 : i32
    %126 = tpu.dynamic_rotate %125 by %c1_i32_67 dim 0 : vector<32x128xf32>, i32 -> vector<32x128xf32>
    %cst_68 = arith.constant 0.000000e+00 : f32
    %127 = vector.broadcast %cst_68 : f32 to vector<32x128xf32>
    %128 = arith.select %88, %127, %126 : vector<32x128xi1>, vector<32x128xf32>
    %c31_i32_69 = arith.constant 31 : i32
    %129 = tpu.dynamic_rotate %125 by %c31_i32_69 dim 0 : vector<32x128xf32>, i32 -> vector<32x128xf32>
    %cst_70 = arith.constant 0.000000e+00 : f32
    %130 = vector.broadcast %cst_70 : f32 to vector<32x128xf32>
    %131 = arith.select %90, %130, %129 : vector<32x128xi1>, vector<32x128xf32>
    %132 = tpu.concatenate %128, %125, %131 in 1 : vector<32x128xf32>, vector<32x128xf32>, vector<32x128xf32> -> vector<32x384xf32>
    %c0_71 = arith.constant 0 : index
    %c0_72 = arith.constant 0 : index
    %133 = vector.load %arg6[%c0_71, %c0_72] : memref<384x64xf32, #tpu.memory_space<vmem>>, vector<384x64xf32>
    %cst_73 = arith.constant dense<0.000000e+00> : vector<32x64xf32>
    %134 = tpu.matmul %132, %133, %cst_73 {dimension_numbers = #tpu.dot_dimension_numbers<[1], [0], [0], [1], [0, 0, 1, 1], [], []>} : vector<32x384xf32>, vector<384x64xf32>, vector<32x64xf32> -> vector<32x64xf32>
    %c0_74 = arith.constant 0 : index
    %c0_75 = arith.constant 0 : index
    %135 = vector.load %arg9[%c0_74, %c0_75] : memref<1x64xf32, #tpu.memory_space<vmem>>, vector<1x64xf32>
    %136 = vector.broadcast %135 : vector<1x64xf32> to vector<32x64xf32>
    %137 = arith.addf %134, %136 : vector<32x64xf32>
    %cst_76 = arith.constant 0.000000e+00 : f32
    %138 = vector.broadcast %cst_76 : f32 to vector<32x64xf32>
    %139 = arith.cmpf oge, %137, %138 : vector<32x64xf32>
    %140 = vector.broadcast %2 : f32 to vector<32x64xf32>
    %141 = arith.mulf %140, %137 : vector<32x64xf32>
    %142 = arith.select %139, %137, %141 : vector<32x64xi1>, vector<32x64xf32>
    %c0_77 = arith.constant 0 : index
    %c0_78 = arith.constant 0 : index
    %143 = vector.load %arg3[%c0_77, %c0_78] : memref<32x1xf32, #tpu.memory_space<vmem>>, vector<32x1xf32>
    %144 = vector.broadcast %143 : vector<32x1xf32> to vector<32x64xf32>
    %145 = arith.mulf %144, %142 : vector<32x64xf32>
    %146 = arith.addf %81, %145 : vector<32x64xf32>
    %c0_79 = arith.constant 0 : index
    %c0_80 = arith.constant 0 : index
    %147 = vector.load %arg11[%c0_79, %c0_80] : memref<32x64xf32, #tpu.memory_space<vmem>>, vector<32x64xf32>
    tpu.vector_store %arg11[%c0_79, %c0_80], %146 {strides = array<i32>} : memref<32x64xf32, #tpu.memory_space<vmem>>, vector<32x64xf32>,
    return
  }
  func.func @transform_0(%arg0: i32) -> (i32, i32, i32) {
    %c0_i32 = arith.constant 0 : i32
    %c0_i32_0 = arith.constant 0 : i32
    %c0_i32_1 = arith.constant 0 : i32
    %c0_i32_2 = arith.constant 0 : i32
    return %c0_i32, %c0_i32_0, %c0_i32_1 : i32, i32, i32
  }
  func.func @transform_1(%arg0: i32) -> (i32, i32) {
    %c0_i32 = arith.constant 0 : i32
    %c0_i32_0 = arith.constant 0 : i32
    %c0_i32_1 = arith.constant 0 : i32
    return %c0_i32, %c0_i32_0 : i32, i32
  }
  func.func @transform_2(%arg0: i32) -> (i32, i32) {
    %c0_i32 = arith.constant 0 : i32
    %c0_i32_0 = arith.constant 0 : i32
    %c0_i32_1 = arith.constant 0 : i32
    return %c0_i32, %c0_i32_0 : i32, i32
  }
  func.func @transform_3(%arg0: i32) -> (i32, i32) {
    %c0_i32 = arith.constant 0 : i32
    %c0_i32_0 = arith.constant 0 : i32
    %c0_i32_1 = arith.constant 0 : i32
    return %c0_i32, %c0_i32_0 : i32, i32
  }
  func.func @transform_4(%arg0: i32) -> (i32, i32) {
    %c0_i32 = arith.constant 0 : i32
    %c0_i32_0 = arith.constant 0 : i32
    %c0_i32_1 = arith.constant 0 : i32
    return %c0_i32, %c0_i32_0 : i32, i32
  }
  func.func @transform_5(%arg0: i32) -> (i32, i32) {
    %c0_i32 = arith.constant 0 : i32
    %c0_i32_0 = arith.constant 0 : i32
    %c0_i32_1 = arith.constant 0 : i32
    return %c0_i32, %c0_i32_0 : i32, i32
  }
  func.func @transform_6(%arg0: i32) -> (i32, i32) {
    %c0_i32 = arith.constant 0 : i32
    %c0_i32_0 = arith.constant 0 : i32
    %c0_i32_1 = arith.constant 0 : i32
    return %c0_i32, %c0_i32_0 : i32, i32
  }
  func.func @transform_7(%arg0: i32) -> (i32, i32) {
    %c0_i32 = arith.constant 0 : i32
    %c0_i32_0 = arith.constant 0 : i32
    %c0_i32_1 = arith.constant 0 : i32
    return %c0_i32, %c0_i32_0 : i32, i32
  }
  func.func @transform_8(%arg0: i32) -> (i32, i32) {
    %c0_i32 = arith.constant 0 : i32
    %c0_i32_0 = arith.constant 0 : i32
    %c0_i32_1 = arith.constant 0 : i32
    return %c0_i32, %c0_i32_0 : i32, i32
  }
  func.func @transform_9(%arg0: i32) -> i32 {
    %c0_i32 = arith.constant 0 : i32
    %c0_i32_0 = arith.constant 0 : i32
    return %c0_i32 : i32
  }
  func.func @transform_10(%arg0: i32) -> (i32, i32) {
    %c0_i32 = arith.constant 0 : i32
    %c0_i32_0 = arith.constant 0 : i32
    %c0_i32_1 = arith.constant 0 : i32
    return %c0_i32, %c0_i32_0 : i32, i32
  }
}

</mosaic_0001>

<llo_original>
// kernel: tpu_custom_call.1
$region0: #{tpu_custom_call.1}
  #allocation0 [shape = 'u32[]', space=smem, size = 0x4, offset = 0x4, fixed_abs, tag = 'smem constant byte address 0x4 - core index']
  #allocation1 [shape = 'u32[144,128]{1,0:T(1,128)}', space=vmem, size = 0x12000, scoped, tag = 'internal scratch']
  %s0 = inlined_call_operand.vmem [shape: f32[6,32,64], index: 0, kind: input, shape index: {}]
  %s1 = inlined_call_operand.vmem [shape: f32[96,1], index: 1, kind: input, shape index: {}]
  %s2 = inlined_call_operand.vmem [shape: f32[32,1], index: 2, kind: input, shape index: {}]
  %s3 = inlined_call_operand.vmem [shape: f32[384,128], index: 3, kind: input, shape index: {}]
  %s4 = inlined_call_operand.hbm [shape: f32[384,128], index: 4, kind: input, shape index: {}]
  %s5 = inlined_call_operand.vmem [shape: f32[384,64], index: 5, kind: input, shape index: {}]
  %s6 = inlined_call_operand.vmem [shape: f32[1,128], index: 6, kind: input, shape index: {}]
  %s7 = inlined_call_operand.vmem [shape: f32[1,128], index: 7, kind: input, shape index: {}]
  %s8 = inlined_call_operand.vmem [shape: f32[1,64], index: 8, kind: input, shape index: {}]
  %s9 = inlined_call_operand.vmem [shape: f32[3], index: 9, kind: input, shape index: {}]
  %s10 = inlined_call_operand.hbm [shape: f32[32,64], index: 10, kind: output, shape index: {}]
  %s11 = sld [smem:[#allocation0]]
  $region58: #{tpu_custom_call.1} parent=0
    _
  %s13 = ssub.s32 1, %s11
  %s14 = scalar_select 0, %s13, %s11
  $region1: #{tpu_custom_call.1} parent=0
    #allocation2 [shape = 'u8[196608]{0}', space=vmem, size = 0x30000, scoped, tag = 'input window, operand 4, single buffered']
    #allocation3 [shape = 's32[1]{0}', space=sflag, size = 0x4, scoped, tag = 'scoped memory for tpu_custom_call.1']
    #allocation4 [shape = 's32[1]{0}', space=sflag, size = 0x4, scoped, tag = 'scoped memory for tpu_custom_call.1']
    #allocation5 [shape = 's32[1]{0}', space=sflag, size = 0x4, scoped, tag = 'scoped memory for tpu_custom_call.1']
    #allocation6 [shape = 'u8[512]{0}', space=smem, size = 0x200, scoped, tag = 'input window, operand 9, single buffered']
    #allocation7 [shape = 'u8[16384]{0}', space=vmem, size = 0x4000, scoped, tag = 'output window, operand 0, single buffered']
    %15 = vsyncpa [#allocation3], 0
    %16 = vsyncpa [#allocation5], 0
    %17 = vsyncpa [#allocation4], 0
    // Predicated region
    $region2: #{tpu_custom_call.1} parent=1 // pred_check
      _
    $region3: #{tpu_custom_call.1} parent=1 // pred_check_branch
      %19 = sbr.rel (0) target = $region5
    $region4: #{tpu_custom_call.1} parent=1 // pred_region
      _
    $region5: #{tpu_custom_call.1} parent=1 // pred_fallthru
      _
    // Predicated region
    $region6: #{tpu_custom_call.1} parent=1 // pred_check
      _
    $region7: #{tpu_custom_call.1} parent=1 // pred_check_branch
      %21 = sbr.rel (0) target = $region9
    $region8: #{tpu_custom_call.1} parent=1 // pred_region
      _
    $region9: #{tpu_custom_call.1} parent=1 // pred_fallthru
      _
    // Predicated region
    $region10: #{tpu_custom_call.1} parent=1 // pred_check
      _
    $region11: #{tpu_custom_call.1} parent=1 // pred_check_branch
      %23 = sbr.rel (0) target = $region13
    $region12: #{tpu_custom_call.1} parent=1 // pred_region
      _
    $region13: #{tpu_custom_call.1} parent=1 // pred_fallthru
      _
    // Predicated region
    $region14: #{tpu_custom_call.1} parent=1 // pred_check
      _
    $region15: #{tpu_custom_call.1} parent=1 // pred_check_branch
      %25 = sbr.rel (0) target = $region17
    $region16: #{tpu_custom_call.1} parent=1 // pred_region
      _
    $region17: #{tpu_custom_call.1} parent=1 // pred_fallthru
      _
    // Predicated region
    $region18: #{tpu_custom_call.1} parent=1 // pred_check
      _
    $region19: #{tpu_custom_call.1} parent=1 // pred_check_branch
      %27 = sbr.rel (0) target = $region21
    $region20: #{tpu_custom_call.1} parent=1 // pred_region
      %s29 = ssub.s32 6144, 6144
      %30 = vsyncadd [#allocation3], %s29
      %s31 = sshll.u32 [#allocation2], 4
      %s32 = int_to_ptr.vmem [resolvable:$true] %s31
      %37 = dma.hbm_to_vmem [thread:$0]  %s4, 6144, %s32, [#allocation3], 128, 128, 8
    $region21: #{tpu_custom_call.1} parent=1 // pred_fallthru
      _
    // Predicated region
    $region22: #{tpu_custom_call.1} parent=1 // pred_check
      _
    $region23: #{tpu_custom_call.1} parent=1 // pred_check_branch
      %39 = sbr.rel (0) target = $region25
    $region24: #{tpu_custom_call.1} parent=1 // pred_region
      _
    $region25: #{tpu_custom_call.1} parent=1 // pred_fallthru
      _
    // Predicated region
    $region26: #{tpu_custom_call.1} parent=1 // pred_check
      _
    $region27: #{tpu_custom_call.1} parent=1 // pred_check_branch
      %41 = sbr.rel (0) target = $region29
    $region28: #{tpu_custom_call.1} parent=1 // pred_region
      _
    $region29: #{tpu_custom_call.1} parent=1 // pred_fallthru
      _
    // Predicated region
    $region30: #{tpu_custom_call.1} parent=1 // pred_check
      _
    $region31: #{tpu_custom_call.1} parent=1 // pred_check_branch
      %43 = sbr.rel (0) target = $region33
    $region32: #{tpu_custom_call.1} parent=1 // pred_region
      _
    $region33: #{tpu_custom_call.1} parent=1 // pred_fallthru
      _
    // Predicated region
    $region34: #{tpu_custom_call.1} parent=1 // pred_check
      _
    $region35: #{tpu_custom_call.1} parent=1 // pred_check_branch
      %45 = sbr.rel (0) target = $region37
    $region36: #{tpu_custom_call.1} parent=1 // pred_region
      _
    $region37: #{tpu_custom_call.1} parent=1 // pred_fallthru
      _
    // Predicated region
    $region38: #{tpu_custom_call.1} parent=1 // pred_check
      _
    $region39: #{tpu_custom_call.1} parent=1 // pred_check_branch
      %47 = sbr.rel (0) target = $region41
    $region40: #{tpu_custom_call.1} parent=1 // pred_region
      %s49 = ssub.s32 16, 16
      %50 = vsyncadd [#allocation5], %s49
      %s52 = sshll.u32 %s9, 4
      %s53 = int_to_ptr.vmem [resolvable:$true] %s52
      %55 = dma.vmem_to_smem %s53, 16, [#allocation6], [#allocation5]
    $region41: #{tpu_custom_call.1} parent=1 // pred_fallthru
      _
    // Predicated region
    $region42: #{tpu_custom_call.1} parent=1 // pred_check
      _
    $region43: #{tpu_custom_call.1} parent=1 // pred_check_branch
      %57 = sbr.rel (0) target = $region45
    $region44: #{tpu_custom_call.1} parent=1 // pred_region
      %58 = dma.done [#allocation3], 6144
    $region45: #{tpu_custom_call.1} parent=1 // pred_fallthru
      _
    // Predicated region
    $region46: #{tpu_custom_call.1} parent=1 // pred_check
      _
    $region47: #{tpu_custom_call.1} parent=1 // pred_check_branch
      %60 = sbr.rel (0) target = $region49
    $region48: #{tpu_custom_call.1} parent=1 // pred_region
      %61 = dma.done [#allocation5], 16
    $region49: #{tpu_custom_call.1} parent=1 // pred_fallthru
      _
    %62 = sfence
    %s63 = sld [smem:[#allocation6]]
    %s64 = sld [smem:[#allocation6 + $0x1]]
    %s65 = sld [smem:[#allocation6 + $0x2]]
    %v66 = vld [vmem:[%s0] sm:$0xff]
    %v67 = vld [vmem:[%s0 + $0x8] sm:$0xff]
    %v68 = vld [vmem:[%s0 + $0x10] sm:$0xff]
    %v69 = vld [vmem:[%s0 + $0x18] sm:$0xff]
    %s70 = scalar_lea.vmem %s0, 32
    %v71 = vld [vmem:[%s70] sm:$0xff]
    %v72 = vld [vmem:[%s70 + $0x8] sm:$0xff]
    %v73 = vld [vmem:[%s70 + $0x10] sm:$0xff]
    %v74 = vld [vmem:[%s70 + $0x18] sm:$0xff]
    %s75 = scalar_lea.vmem %s0, 64
    %v76 = vld [vmem:[%s75] sm:$0xff]
    %v77 = vld [vmem:[%s75 + $0x8] sm:$0xff]
    %v78 = vld [vmem:[%s75 + $0x10] sm:$0xff]
    %v79 = vld [vmem:[%s75 + $0x18] sm:$0xff]
    %s80 = scalar_lea.vmem %s0, 96
    %v81 = vld [vmem:[%s80] sm:$0xff]
    %v82 = vld [vmem:[%s80 + $0x8] sm:$0xff]
    %v83 = vld [vmem:[%s80 + $0x10] sm:$0xff]
    %v84 = vld [vmem:[%s80 + $0x18] sm:$0xff]
    %s85 = scalar_lea.vmem %s0, 128
    %v86 = vld [vmem:[%s85] sm:$0xff]
    %v87 = vld [vmem:[%s85 + $0x8] sm:$0xff]
    %v88 = vld [vmem:[%s85 + $0x10] sm:$0xff]
    %v89 = vld [vmem:[%s85 + $0x18] sm:$0xff]
    %s90 = scalar_lea.vmem %s0, 160
    %v91 = vld [vmem:[%s90] sm:$0xff]
    %v92 = vld [vmem:[%s90 + $0x8] sm:$0xff]
    %v93 = vld [vmem:[%s90 + $0x10] sm:$0xff]
    %v94 = vld [vmem:[%s90 + $0x18] sm:$0xff]
    %107 = vrot.lane.b32.xlu0 %v91, 64
    %v108 = vpop.permute.xlu0 %107
    %109 = vrot.lane.b32.xlu0 %v92, 64
    %v110 = vpop.permute.xlu0 %109
    %111 = vrot.lane.b32.xlu0 %v93, 64
    %v112 = vpop.permute.xlu0 %111
    %113 = vrot.lane.b32.xlu0 %v94, 64
    %v114 = vpop.permute.xlu0 %113
    %115 = vrot.lane.b32.xlu0 %v86, 64
    %v116 = vpop.permute.xlu0 %115
    %117 = vrot.lane.b32.xlu0 %v87, 64
    %v118 = vpop.permute.xlu0 %117
    %119 = vrot.lane.b32.xlu0 %v88, 64
    %v120 = vpop.permute.xlu0 %119
    %121 = vrot.lane.b32.xlu0 %v89, 64
    %v122 = vpop.permute.xlu0 %121
    %123 = vrot.lane.b32.xlu0 %v81, 64
    %v124 = vpop.permute.xlu0 %123
    %125 = vrot.lane.b32.xlu0 %v82, 64
    %v126 = vpop.permute.xlu0 %125
    %127 = vrot.lane.b32.xlu0 %v83, 64
    %v128 = vpop.permute.xlu0 %127
    %129 = vrot.lane.b32.xlu0 %v84, 64
    %v130 = vpop.permute.xlu0 %129
    %vm143 = vcmask 523264
    %v144 = vsel %vm143, %v66, %v108
    %v145 = vsel %vm143, %v67, %v110
    %v146 = vsel %vm143, %v68, %v112
    %v147 = vsel %vm143, %v69, %v114
    %v148 = vsel %vm143, %v71, %v116
    %v149 = vsel %vm143, %v72, %v118
    %v150 = vsel %vm143, %v73, %v120
    %v151 = vsel %vm143, %v74, %v122
    %v152 = vsel %vm143, %v76, %v124
    %v153 = vsel %vm143, %v77, %v126
    %v154 = vsel %vm143, %v78, %v128
    %v155 = vsel %vm143, %v79, %v130
    %v156 = vlaneseq
    %v157 = vshrl.u32 %v156, 7
    %v158 = vadd.s32 %v157, 8
    %v159 = vadd.s32 %v157, 16
    %v160 = vadd.s32 %v157, 24
    %v161 = vadd.s32 %v157, 32
    %v162 = vadd.s32 %v157, 40
    %v163 = vadd.s32 %v157, 48
    %v164 = vadd.s32 %v157, 56
    %v165 = vadd.s32 %v157, 64
    %v166 = vadd.s32 %v157, 72
    %v167 = vadd.s32 %v157, 80
    %v168 = vadd.s32 %v157, 88
    %v169 = vand.u32 %v157, 15
    %v170 = vand.u32 %v158, 15
    %v171 = vand.u32 %v159, 15
    %v172 = vand.u32 %v160, 15
    %v173 = vand.u32 %v161, 15
    %v174 = vand.u32 %v162, 15
    %v175 = vand.u32 %v163, 15
    %v176 = vand.u32 %v164, 15
    %v177 = vand.u32 %v165, 15
    %v178 = vand.u32 %v166, 15
    %v179 = vand.u32 %v167, 15
    %v180 = vand.u32 %v168, 15
    %vm181 = vcmp.eq.s32.totalorder %v169, 0
    %vm182 = vcmp.eq.s32.totalorder %v170, 0
    %vm183 = vcmp.eq.s32.totalorder %v171, 0
    %vm184 = vcmp.eq.s32.totalorder %v172, 0
    %vm185 = vcmp.eq.s32.totalorder %v173, 0
    %vm186 = vcmp.eq.s32.totalorder %v174, 0
    %vm187 = vcmp.eq.s32.totalorder %v175, 0
    %vm188 = vcmp.eq.s32.totalorder %v176, 0
    %vm189 = vcmp.eq.s32.totalorder %v177, 0
    %vm190 = vcmp.eq.s32.totalorder %v178, 0
    %vm191 = vcmp.eq.s32.totalorder %v179, 0
    %vm192 = vcmp.eq.s32.totalorder %v180, 0
    %vm193 = vcmp.eq.s32.totalorder %v169, 15
    %vm194 = vcmp.eq.s32.totalorder %v170, 15
    %vm195 = vcmp.eq.s32.totalorder %v171, 15
    %vm196 = vcmp.eq.s32.totalorder %v172, 15
    %vm197 = vcmp.eq.s32.totalorder %v173, 15
    %vm198 = vcmp.eq.s32.totalorder %v174, 15
    %vm199 = vcmp.eq.s32.totalorder %v175, 15
    %vm200 = vcmp.eq.s32.totalorder %v176, 15
    %vm201 = vcmp.eq.s32.totalorder %v177, 15
    %vm202 = vcmp.eq.s32.totalorder %v178, 15
    %vm203 = vcmp.eq.s32.totalorder %v179, 15
    %vm204 = vcmp.eq.s32.totalorder %v180, 15
    %v205 = vrot.slane %v144, 7
    %v206 = vrot.slane %v145, 7
    %v207 = vrot.slane %v146, 7
    %v208 = vrot.slane %v147, 7
    %v209 = vrot.slane %v148, 7
    %v210 = vrot.slane %v149, 7
    %v211 = vrot.slane %v150, 7
    %v212 = vrot.slane %v151, 7
    %v213 = vrot.slane %v152, 7
    %v214 = vrot.slane %v153, 7
    %v215 = vrot.slane %v154, 7
    %v216 = vrot.slane %v155, 7
    %vm217 = vcmp.lt.s32.totalorder %v157, 1
    %v218 = vsel %vm217, %v215, %v216
    %v219 = vsel %vm217, %v214, %v215
    %v220 = vsel %vm217, %v213, %v214
    %v221 = vsel %vm217, %v212, %v213
    %v222 = vsel %vm217, %v211, %v212
    %v223 = vsel %vm217, %v210, %v211
    %v224 = vsel %vm217, %v209, %v210
    %v225 = vsel %vm217, %v208, %v209
    %v226 = vsel %vm217, %v207, %v208
    %v227 = vsel %vm217, %v206, %v207
    %v228 = vsel %vm217, %v205, %v206
    %v229 = vsel %vm217, %v216, %v205
    %v230 = vsel %vm181, 0.0, %v229
    %v231 = vsel %vm182, 0.0, %v228
    %v232 = vsel %vm183, 0.0, %v227
    %v233 = vsel %vm184, 0.0, %v226
    %v234 = vsel %vm185, 0.0, %v225
    %v235 = vsel %vm186, 0.0, %v224
    %v236 = vsel %vm187, 0.0, %v223
    %v237 = vsel %vm188, 0.0, %v222
    %v238 = vsel %vm189, 0.0, %v221
    %v239 = vsel %vm190, 0.0, %v220
    %v240 = vsel %vm191, 0.0, %v219
    %v241 = vsel %vm192, 0.0, %v218
    %v242 = vrot.slane %v144, 1
    %v243 = vrot.slane %v145, 1
    %v244 = vrot.slane %v146, 1
    %v245 = vrot.slane %v147, 1
    %v246 = vrot.slane %v148, 1
    %v247 = vrot.slane %v149, 1
    %v248 = vrot.slane %v150, 1
    %v249 = vrot.slane %v151, 1
    %v250 = vrot.slane %v152, 1
    %v251 = vrot.slane %v153, 1
    %v252 = vrot.slane %v154, 1
    %v253 = vrot.slane %v155, 1
    %vm254 = vcmp.lt.s32.totalorder %v157, 7
    %v255 = vsel %vm254, %v252, %v253
    %v256 = vsel %vm254, %v251, %v252
    %v257 = vsel %vm254, %v250, %v251
    %v258 = vsel %vm254, %v249, %v250
    %v259 = vsel %vm254, %v248, %v249
    %v260 = vsel %vm254, %v247, %v248
    %v261 = vsel %vm254, %v246, %v247
    %v262 = vsel %vm254, %v245, %v246
    %v263 = vsel %vm254, %v244, %v245
    %v264 = vsel %vm254, %v243, %v244
    %v265 = vsel %vm254, %v242, %v243
    %v266 = vsel %vm254, %v253, %v242
    %v267 = vsel %vm193, 0.0, %v265
    %v268 = vsel %vm194, 0.0, %v264
    %v269 = vsel %vm195, 0.0, %v263
    %v270 = vsel %vm196, 0.0, %v262
    %v271 = vsel %vm197, 0.0, %v261
    %v272 = vsel %vm198, 0.0, %v260
    %v273 = vsel %vm199, 0.0, %v259
    %v274 = vsel %vm200, 0.0, %v258
    %v275 = vsel %vm201, 0.0, %v257
    %v276 = vsel %vm202, 0.0, %v256
    %v277 = vsel %vm203, 0.0, %v255
    %v278 = vsel %vm204, 0.0, %v266
    %v279 = vld [vmem:[%s3] sm:$0xff]
    %v280 = vld [vmem:[%s3 + $0x8] sm:$0xff]
    %v281 = vld [vmem:[%s3 + $0x10] sm:$0xff]
    %v282 = vld [vmem:[%s3 + $0x18] sm:$0xff]
    %v283 = vld [vmem:[%s3 + $0x20] sm:$0xff]
    %v284 = vld [vmem:[%s3 + $0x28] sm:$0xff]
    %v285 = vld [vmem:[%s3 + $0x30] sm:$0xff]
    %v286 = vld [vmem:[%s3 + $0x38] sm:$0xff]
    %v287 = vld [vmem:[%s3 + $0x40] sm:$0xff]
    %v288 = vld [vmem:[%s3 + $0x48] sm:$0xff]
    %v289 = vld [vmem:[%s3 + $0x50] sm:$0xff]
    %v290 = vld [vmem:[%s3 + $0x58] sm:$0xff]
    %v291 = vld [vmem:[%s3 + $0x60] sm:$0xff]
    %v292 = vld [vmem:[%s3 + $0x68] sm:$0xff]
    %v293 = vld [vmem:[%s3 + $0x70] sm:$0xff]
    %v294 = vld [vmem:[%s3 + $0x78] sm:$0xff]
    %v295 = vld [vmem:[%s3 + $0x80] sm:$0xff]
    %v296 = vld [vmem:[%s3 + $0x88] sm:$0xff]
    %v297 = vld [vmem:[%s3 + $0x90] sm:$0xff]
    %v298 = vld [vmem:[%s3 + $0x98] sm:$0xff]
    %v299 = vld [vmem:[%s3 + $0xa0] sm:$0xff]
    %v300 = vld [vmem:[%s3 + $0xa8] sm:$0xff]
    %v301 = vld [vmem:[%s3 + $0xb0] sm:$0xff]
    %v302 = vld [vmem:[%s3 + $0xb8] sm:$0xff]
    %v303 = vld [vmem:[%s3 + $0xc0] sm:$0xff]
    %v304 = vld [vmem:[%s3 + $0xc8] sm:$0xff]
    %v305 = vld [vmem:[%s3 + $0xd0] sm:$0xff]
    %v306 = vld [vmem:[%s3 + $0xd8] sm:$0xff]
    %v307 = vld [vmem:[%s3 + $0xe0] sm:$0xff]
    %v308 = vld [vmem:[%s3 + $0xe8] sm:$0xff]
    %v309 = vld [vmem:[%s3 + $0xf0] sm:$0xff]
    %v310 = vld [vmem:[%s3 + $0xf8] sm:$0xff]
    %v311 = vld [vmem:[%s3 + $0x100] sm:$0xff]
    %v312 = vld [vmem:[%s3 + $0x108] sm:$0xff]
    %v313 = vld [vmem:[%s3 + $0x110] sm:$0xff]
    %v314 = vld [vmem:[%s3 + $0x118] sm:$0xff]
    %v315 = vld [vmem:[%s3 + $0x120] sm:$0xff]
    %v316 = vld [vmem:[%s3 + $0x128] sm:$0xff]
    %v317 = vld [vmem:[%s3 + $0x130] sm:$0xff]
    %v318 = vld [vmem:[%s3 + $0x138] sm:$0xff]
    %v319 = vld [vmem:[%s3 + $0x140] sm:$0xff]
    %v320 = vld [vmem:[%s3 + $0x148] sm:$0xff]
    %v321 = vld [vmem:[%s3 + $0x150] sm:$0xff]
    %v322 = vld [vmem:[%s3 + $0x158] sm:$0xff]
    %v323 = vld [vmem:[%s3 + $0x160] sm:$0xff]
    %v324 = vld [vmem:[%s3 + $0x168] sm:$0xff]
    %v325 = vld [vmem:[%s3 + $0x170] sm:$0xff]
    %v326 = vld [vmem:[%s3 + $0x178] sm:$0xff]
    %v327 = vld [vmem:[%s6] sm:$0x1]
    %v329 = vlaneseq
    %v330 = vshrl.u32 %v329, 7
    %v331 = vsub.s32 0, %v330
    %v332 = vrot.slane %v327, %v331
    %334 = vmatprep.subr.mxu0 0.0
    %335 = vmatpush1.msra.mxu0 %v294
    %336 = vmatprep.subr.mxu0 0.0
    %337 = vmatpush1.msra.mxu0 %v293
    %338 = vmatprep.subr.mxu0 0.0
    %339 = vmatpush1.msra.mxu0 %v292
    %340 = vmatprep.subr.mxu0 0.0
    %341 = vmatpush1.msra.mxu0 %v291
    %342 = vmatprep.subr.mxu0 0.0
    %343 = vmatpush1.msra.mxu0 %v290
    %344 = vmatprep.subr.mxu0 0.0
    %345 = vmatpush1.msra.mxu0 %v289
    %346 = vmatprep.subr.mxu0 0.0
    %347 = vmatpush1.msra.mxu0 %v288
    %348 = vmatprep.subr.mxu0 0.0
    %349 = vmatpush1.msra.mxu0 %v287
    %350 = vmatprep.subr.mxu0 0.0
    %351 = vmatpush1.msra.mxu0 %v286
    %352 = vmatprep.subr.mxu0 0.0
    %353 = vmatpush1.msra.mxu0 %v285
    %354 = vmatprep.subr.mxu0 0.0
    %355 = vmatpush1.msra.mxu0 %v284
    %356 = vmatprep.subr.mxu0 0.0
    %357 = vmatpush1.msra.mxu0 %v283
    %358 = vmatprep.subr.mxu0 0.0
    %359 = vmatpush1.msra.mxu0 %v282
    %360 = vmatprep.subr.mxu0 0.0
    %361 = vmatpush1.msra.mxu0 %v281
    %362 = vmatprep.subr.mxu0 0.0
    %363 = vmatpush1.msra.mxu0 %v280
    %364 = vmatprep.subr.mxu0 0.0
    %365 = vmatpush1.msra.mxu0 %v279
    %366 = vmatprep.subr.mxu0 0.0
    %367 = vmatpush2.msra.mxu0 %v310
    %368 = vmatprep.subr.mxu0 0.0
    %369 = vmatpush2.msra.mxu0 %v309
    %370 = vmatprep.subr.mxu0 0.0
    %371 = vmatpush2.msra.mxu0 %v308
    %372 = vmatprep.subr.mxu0 0.0
    %373 = vmatpush2.msra.mxu0 %v307
    %374 = vmatprep.subr.mxu0 0.0
    %375 = vmatpush2.msra.mxu0 %v306
    %376 = vmatprep.subr.mxu0 0.0
    %377 = vmatpush2.msra.mxu0 %v305
    %378 = vmatprep.subr.mxu0 0.0
    %379 = vmatpush2.msra.mxu0 %v304
    %380 = vmatprep.subr.mxu0 0.0
    %381 = vmatpush2.msra.mxu0 %v303
    %382 = vmatprep.subr.mxu0 0.0
    %383 = vmatpush2.msra.mxu0 %v302
    %384 = vmatprep.subr.mxu0 0.0
    %385 = vmatpush2.msra.mxu0 %v301
    %386 = vmatprep.subr.mxu0 0.0
    %387 = vmatpush2.msra.mxu0 %v300
    %388 = vmatprep.subr.mxu0 0.0
    %389 = vmatpush2.msra.mxu0 %v299
    %390 = vmatprep.subr.mxu0 0.0
    %391 = vmatpush2.msra.mxu0 %v298
    %392 = vmatprep.subr.mxu0 0.0
    %393 = vmatpush2.msra.mxu0 %v297
    %394 = vmatprep.subr.mxu0 0.0
    %395 = vmatpush2.msra.mxu0 %v296
    %396 = vmatprep.subr.mxu0 0.0
    %397 = vmatpush2.msra.mxu0 %v295
    %398 = vmatprep.mubr.f32.mxu0 %v144
    %399 = vmatmul.mubr.f32.gmra.mxu0 %v230
    %v400 = vpop.f32.mrf.mxu0
    %v401 = vadd.f32 %v332, %v400
    %v402 = vpop.f32.mrf.mxu0
    %403 = vmatprep.mubr.f32.mxu0 %v145
    %404 = vmatmul.mubr.f32.gmra.mxu0 %v231
    %v405 = vpop.f32.mrf.mxu0
    %v406 = vadd.f32 %v332, %v405
    %v407 = vpop.f32.mrf.mxu0
    %408 = vmatprep.mubr.f32.mxu0 %v146
    %409 = vmatmul.mubr.f32.gmra.mxu0 %v232
    %v410 = vpop.f32.mrf.mxu0
    %v411 = vadd.f32 %v332, %v410
    %v412 = vpop.f32.mrf.mxu0
    %413 = vmatprep.mubr.f32.mxu0 %v147
    %414 = vmatmul.mubr.f32.gmra.mxu0 %v233
    %v415 = vpop.f32.mrf.mxu0
    %v416 = vadd.f32 %v332, %v415
    %v417 = vpop.f32.mrf.mxu0
    %418 = vmatprep.mubr.f32.mxu0 %v148
    %419 = vmatmul.mubr.f32.gmra.mxu0 %v234
    %v420 = vpop.f32.mrf.mxu0
    %v421 = vadd.f32 %v332, %v420
    %v422 = vpop.f32.mrf.mxu0
    %423 = vmatprep.mubr.f32.mxu0 %v149
    %424 = vmatmul.mubr.f32.gmra.mxu0 %v235
    %v425 = vpop.f32.mrf.mxu0
    %v426 = vadd.f32 %v332, %v425
    %v427 = vpop.f32.mrf.mxu0
    %428 = vmatprep.mubr.f32.mxu0 %v150
    %429 = vmatmul.mubr.f32.gmra.mxu0 %v236
    %v430 = vpop.f32.mrf.mxu0
    %v431 = vadd.f32 %v332, %v430
    %v432 = vpop.f32.mrf.mxu0
    %433 = vmatprep.mubr.f32.mxu0 %v151
    %434 = vmatmul.mubr.f32.gmra.mxu0 %v237
    %v435 = vpop.f32.mrf.mxu0
    %v436 = vadd.f32 %v332, %v435
    %v437 = vpop.f32.mrf.mxu0
    %438 = vmatprep.mubr.f32.mxu0 %v152
    %439 = vmatmul.mubr.f32.gmra.mxu0 %v238
    %v440 = vpop.f32.mrf.mxu0
    %v441 = vadd.f32 %v332, %v440
    %v442 = vpop.f32.mrf.mxu0
    %443 = vmatprep.mubr.f32.mxu0 %v153
    %444 = vmatmul.mubr.f32.gmra.mxu0 %v239
    %v445 = vpop.f32.mrf.mxu0
    %v446 = vadd.f32 %v332, %v445
    %v447 = vpop.f32.mrf.mxu0
    %448 = vmatprep.mubr.f32.mxu0 %v154
    %449 = vmatmul.mubr.f32.gmra.mxu0 %v240
    %v450 = vpop.f32.mrf.mxu0
    %v451 = vadd.f32 %v332, %v450
    %v452 = vpop.f32.mrf.mxu0
    %453 = vmatprep.mubr.f32.mxu0 %v155
    %454 = vmatmul.mubr.f32.gmra.mxu0 %v241
    %v455 = vpop.f32.mrf.mxu0
    %v456 = vadd.f32 %v332, %v455
    %v457 = vpop.f32.mrf.mxu0
    %458 = vdwg.mxu0
    %459 = vmatprep.subr.mxu0 0.0
    %460 = vmatpush1.msra.mxu0 %v326
    %461 = vmatprep.subr.mxu0 0.0
    %462 = vmatpush1.msra.mxu0 %v325
    %463 = vmatprep.subr.mxu0 0.0
    %464 = vmatpush1.msra.mxu0 %v324
    %465 = vmatprep.subr.mxu0 0.0
    %466 = vmatpush1.msra.mxu0 %v323
    %467 = vmatprep.subr.mxu0 0.0
    %468 = vmatpush1.msra.mxu0 %v322
    %469 = vmatprep.subr.mxu0 0.0
    %470 = vmatpush1.msra.mxu0 %v321
    %471 = vmatprep.subr.mxu0 0.0
    %472 = vmatpush1.msra.mxu0 %v320
    %473 = vmatprep.subr.mxu0 0.0
    %474 = vmatpush1.msra.mxu0 %v319
    %475 = vmatprep.subr.mxu0 0.0
    %476 = vmatpush1.msra.mxu0 %v318
    %477 = vmatprep.subr.mxu0 0.0
    %478 = vmatpush1.msra.mxu0 %v317
    %479 = vmatprep.subr.mxu0 0.0
    %480 = vmatpush1.msra.mxu0 %v316
    %481 = vmatprep.subr.mxu0 0.0
    %482 = vmatpush1.msra.mxu0 %v315
    %483 = vmatprep.subr.mxu0 0.0
    %484 = vmatpush1.msra.mxu0 %v314
    %485 = vmatprep.subr.mxu0 0.0
    %486 = vmatpush1.msra.mxu0 %v313
    %487 = vmatprep.subr.mxu0 0.0
    %488 = vmatpush1.msra.mxu0 %v312
    %489 = vmatprep.subr.mxu0 0.0
    %490 = vmatpush1.msra.mxu0 %v311
    %491 = vmatprep.subr.mxu0 0.0
    %492 = vmatpush2.msra.mxu0 0.0
    %493 = vmatprep.subr.mxu0 0.0
    %494 = vmatpush2.msra.mxu0 0.0
    %495 = vmatprep.subr.mxu0 0.0
    %496 = vmatpush2.msra.mxu0 0.0
    %497 = vmatprep.subr.mxu0 0.0
    %498 = vmatpush2.msra.mxu0 0.0
    %499 = vmatprep.subr.mxu0 0.0
    %500 = vmatpush2.msra.mxu0 0.0
    %501 = vmatprep.subr.mxu0 0.0
    %502 = vmatpush2.msra.mxu0 0.0
    %503 = vmatprep.subr.mxu0 0.0
    %504 = vmatpush2.msra.mxu0 0.0
    %505 = vmatprep.subr.mxu0 0.0
    %506 = vmatpush2.msra.mxu0 0.0
    %507 = vmatprep.subr.mxu0 0.0
    %508 = vmatpush2.msra.mxu0 0.0
    %509 = vmatprep.subr.mxu0 0.0
    %510 = vmatpush2.msra.mxu0 0.0
    %511 = vmatprep.subr.mxu0 0.0
    %512 = vmatpush2.msra.mxu0 0.0
    %513 = vmatprep.subr.mxu0 0.0
    %514 = vmatpush2.msra.mxu0 0.0
    %515 = vmatprep.subr.mxu0 0.0
    %516 = vmatpush2.msra.mxu0 0.0
    %517 = vmatprep.subr.mxu0 0.0
    %518 = vmatpush2.msra.mxu0 0.0
    %519 = vmatprep.subr.mxu0 0.0
    %520 = vmatpush2.msra.mxu0 0.0
    %521 = vmatprep.subr.mxu0 0.0
    %522 = vmatpush2.msra.mxu0 0.0
    %523 = vmatprep.mubr.f32.mxu0 0.0
    %524 = vmatmul.mubr.f32.gmra.mxu0 %v267
    %v525 = vpop.f32.mrf.mxu0
    %v526 = vadd.f32 %v401, %v525
    %v527 = vpop.f32.mrf.mxu0
    %528 = vmatprep.mubr.f32.mxu0 0.0
    %529 = vmatmul.mubr.f32.gmra.mxu0 %v268
    %v530 = vpop.f32.mrf.mxu0
    %v531 = vadd.f32 %v406, %v530
    %v532 = vpop.f32.mrf.mxu0
    %533 = vmatprep.mubr.f32.mxu0 0.0
    %534 = vmatmul.mubr.f32.gmra.mxu0 %v269
    %v535 = vpop.f32.mrf.mxu0
    %v536 = vadd.f32 %v411, %v535
    %v537 = vpop.f32.mrf.mxu0
    %538 = vmatprep.mubr.f32.mxu0 0.0
    %539 = vmatmul.mubr.f32.gmra.mxu0 %v270
    %v540 = vpop.f32.mrf.mxu0
    %v541 = vadd.f32 %v416, %v540
    %v542 = vpop.f32.mrf.mxu0
    %543 = vmatprep.mubr.f32.mxu0 0.0
    %544 = vmatmul.mubr.f32.gmra.mxu0 %v271
    %v545 = vpop.f32.mrf.mxu0
    %v546 = vadd.f32 %v421, %v545
    %v547 = vpop.f32.mrf.mxu0
    %548 = vmatprep.mubr.f32.mxu0 0.0
    %549 = vmatmul.mubr.f32.gmra.mxu0 %v272
    %v550 = vpop.f32.mrf.mxu0
    %v551 = vadd.f32 %v426, %v550
    %v552 = vpop.f32.mrf.mxu0
    %553 = vmatprep.mubr.f32.mxu0 0.0
    %554 = vmatmul.mubr.f32.gmra.mxu0 %v273
    %v555 = vpop.f32.mrf.mxu0
    %v556 = vadd.f32 %v431, %v555
    %v557 = vpop.f32.mrf.mxu0
    %558 = vmatprep.mubr.f32.mxu0 0.0
    %559 = vmatmul.mubr.f32.gmra.mxu0 %v274
    %v560 = vpop.f32.mrf.mxu0
    %v561 = vadd.f32 %v436, %v560
    %v562 = vpop.f32.mrf.mxu0
    %563 = vmatprep.mubr.f32.mxu0 0.0
    %564 = vmatmul.mubr.f32.gmra.mxu0 %v275
    %v565 = vpop.f32.mrf.mxu0
    %v566 = vadd.f32 %v441, %v565
    %v567 = vpop.f32.mrf.mxu0
    %568 = vmatprep.mubr.f32.mxu0 0.0
    %569 = vmatmul.mubr.f32.gmra.mxu0 %v276
    %v570 = vpop.f32.mrf.mxu0
    %v571 = vadd.f32 %v446, %v570
    %v572 = vpop.f32.mrf.mxu0
    %573 = vmatprep.mubr.f32.mxu0 0.0
    %574 = vmatmul.mubr.f32.gmra.mxu0 %v277
    %v575 = vpop.f32.mrf.mxu0
    %v576 = vadd.f32 %v451, %v575
    %v577 = vpop.f32.mrf.mxu0
    %578 = vmatprep.mubr.f32.mxu0 0.0
    %579 = vmatmul.mubr.f32.gmra.mxu0 %v278
    %v580 = vpop.f32.mrf.mxu0
    %v581 = vadd.f32 %v456, %v580
    %v582 = vpop.f32.mrf.mxu0
    %583 = vdwg.mxu0
    %vm584 = vcmp.ge.f32.partialorder %v526, 0.0
    %vm585 = vcmp.ge.f32.partialorder %v531, 0.0
    %vm586 = vcmp.ge.f32.partialorder %v536, 0.0
    %vm587 = vcmp.ge.f32.partialorder %v541, 0.0
    %vm588 = vcmp.ge.f32.partialorder %v546, 0.0
    %vm589 = vcmp.ge.f32.partialorder %v551, 0.0
    %vm590 = vcmp.ge.f32.partialorder %v556, 0.0
    %vm591 = vcmp.ge.f32.partialorder %v561, 0.0
    %vm592 = vcmp.ge.f32.partialorder %v566, 0.0
    %vm593 = vcmp.ge.f32.partialorder %v571, 0.0
    %vm594 = vcmp.ge.f32.partialorder %v576, 0.0
    %vm595 = vcmp.ge.f32.partialorder %v581, 0.0
    %v596 = vstv %s63
    %v597 = vmul.f32 %v596, %v526
    %v598 = vmul.f32 %v596, %v531
    %v599 = vmul.f32 %v596, %v536
    %v600 = vmul.f32 %v596, %v541
    %v601 = vmul.f32 %v596, %v546
    %v602 = vmul.f32 %v596, %v551
    %v603 = vmul.f32 %v596, %v556
    %v604 = vmul.f32 %v596, %v561
    %v605 = vmul.f32 %v596, %v566
    %v606 = vmul.f32 %v596, %v571
    %v607 = vmul.f32 %v596, %v576
    %v608 = vmul.f32 %v596, %v581
    %v609 = vsel %vm584, %v526, %v597
    %v610 = vsel %vm585, %v531, %v598
    %v611 = vsel %vm586, %v536, %v599
    %v612 = vsel %vm587, %v541, %v600
    %v613 = vsel %vm588, %v546, %v601
    %v614 = vsel %vm589, %v551, %v602
    %v615 = vsel %vm590, %v556, %v603
    %v616 = vsel %vm591, %v561, %v604
    %v617 = vsel %vm592, %v566, %v605
    %v618 = vsel %vm593, %v571, %v606
    %v619 = vsel %vm594, %v576, %v607
    %v620 = vsel %vm595, %v581, %v608
    %v621 = vrot.slane %v609, 7
    %v622 = vrot.slane %v610, 7
    %v623 = vrot.slane %v611, 7
    %v624 = vrot.slane %v612, 7
    %v625 = vrot.slane %v613, 7
    %v626 = vrot.slane %v614, 7
    %v627 = vrot.slane %v615, 7
    %v628 = vrot.slane %v616, 7
    %v629 = vrot.slane %v617, 7
    %v630 = vrot.slane %v618, 7
    %v631 = vrot.slane %v619, 7
    %v632 = vrot.slane %v620, 7
    %v633 = vsel %vm217, %v631, %v632
    %v634 = vsel %vm217, %v630, %v631
    %v635 = vsel %vm217, %v629, %v630
    %v636 = vsel %vm217, %v628, %v629
    %v637 = vsel %vm217, %v627, %v628
    %v638 = vsel %vm217, %v626, %v627
    %v639 = vsel %vm217, %v625, %v626
    %v640 = vsel %vm217, %v624, %v625
    %v641 = vsel %vm217, %v623, %v624
    %v642 = vsel %vm217, %v622, %v623
    %v643 = vsel %vm217, %v621, %v622
    %v644 = vsel %vm217, %v632, %v621
    %v645 = vsel %vm181, 0.0, %v644
    %v646 = vsel %vm182, 0.0, %v643
    %v647 = vsel %vm183, 0.0, %v642
    %v648 = vsel %vm184, 0.0, %v641
    %v649 = vsel %vm185, 0.0, %v640
    %v650 = vsel %vm186, 0.0, %v639
    %v651 = vsel %vm187, 0.0, %v638
    %v652 = vsel %vm188, 0.0, %v637
    %v653 = vsel %vm189, 0.0, %v636
    %v654 = vsel %vm190, 0.0, %v635
    %v655 = vsel %vm191, 0.0, %v634
    %v656 = vsel %vm192, 0.0, %v633
    %v657 = vrot.slane %v609, 1
    %v658 = vrot.slane %v610, 1
    %v659 = vrot.slane %v611, 1
    %v660 = vrot.slane %v612, 1
    %v661 = vrot.slane %v613, 1
    %v662 = vrot.slane %v614, 1
    %v663 = vrot.slane %v615, 1
    %v664 = vrot.slane %v616, 1
    %v665 = vrot.slane %v617, 1
    %v666 = vrot.slane %v618, 1
    %v667 = vrot.slane %v619, 1
    %v668 = vrot.slane %v620, 1
    %v669 = vsel %vm254, %v667, %v668
    %v670 = vsel %vm254, %v666, %v667
    %v671 = vsel %vm254, %v665, %v666
    %v672 = vsel %vm254, %v664, %v665
    %v673 = vsel %vm254, %v663, %v664
    %v674 = vsel %vm254, %v662, %v663
    %v675 = vsel %vm254, %v661, %v662
    %v676 = vsel %vm254, %v660, %v661
    %v677 = vsel %vm254, %v659, %v660
    %v678 = vsel %vm254, %v658, %v659
    %v679 = vsel %vm254, %v657, %v658
    %v680 = vsel %vm254, %v668, %v657
    %v681 = vsel %vm193, 0.0, %v679
    %v682 = vsel %vm194, 0.0, %v678
    %v683 = vsel %vm195, 0.0, %v677
    %v684 = vsel %vm196, 0.0, %v676
    %v685 = vsel %vm197, 0.0, %v675
    %v686 = vsel %vm198, 0.0, %v674
    %v687 = vsel %vm199, 0.0, %v673
    %v688 = vsel %vm200, 0.0, %v672
    %v689 = vsel %vm201, 0.0, %v671
    %v690 = vsel %vm202, 0.0, %v670
    %v691 = vsel %vm203, 0.0, %v669
    %v692 = vsel %vm204, 0.0, %v680
    %v693 = vld [vmem:[#allocation2] sm:$0xff]
    %v694 = vld [vmem:[#allocation2 + $0x8] sm:$0xff]
    %v695 = vld [vmem:[#allocation2 + $0x10] sm:$0xff]
    %v696 = vld [vmem:[#allocation2 + $0x18] sm:$0xff]
    %v697 = vld [vmem:[#allocation2 + $0x20] sm:$0xff]
    %v698 = vld [vmem:[#allocation2 + $0x28] sm:$0xff]
    %v699 = vld [vmem:[#allocation2 + $0x30] sm:$0xff]
    %v700 = vld [vmem:[#allocation2 + $0x38] sm:$0xff]
    %v701 = vld [vmem:[#allocation2 + $0x40] sm:$0xff]
    %v702 = vld [vmem:[#allocation2 + $0x48] sm:$0xff]
    %v703 = vld [vmem:[#allocation2 + $0x50] sm:$0xff]
    %v704 = vld [vmem:[#allocation2 + $0x58] sm:$0xff]
    %v705 = vld [vmem:[#allocation2 + $0x60] sm:$0xff]
    %v706 = vld [vmem:[#allocation2 + $0x68] sm:$0xff]
    %v707 = vld [vmem:[#allocation2 + $0x70] sm:$0xff]
    %v708 = vld [vmem:[#allocation2 + $0x78] sm:$0xff]
    %v709 = vld [vmem:[#allocation2 + $0x80] sm:$0xff]
    %v710 = vld [vmem:[#allocation2 + $0x88] sm:$0xff]
    %v711 = vld [vmem:[#allocation2 + $0x90] sm:$0xff]
    %v712 = vld [vmem:[#allocation2 + $0x98] sm:$0xff]
    %v713 = vld [vmem:[#allocation2 + $0xa0] sm:$0xff]
    %v714 = vld [vmem:[#allocation2 + $0xa8] sm:$0xff]
    %v715 = vld [vmem:[#allocation2 + $0xb0] sm:$0xff]
    %v716 = vld [vmem:[#allocation2 + $0xb8] sm:$0xff]
    %v717 = vld [vmem:[#allocation2 + $0xc0] sm:$0xff]
    %v718 = vld [vmem:[#allocation2 + $0xc8] sm:$0xff]
    %v719 = vld [vmem:[#allocation2 + $0xd0] sm:$0xff]
    %v720 = vld [vmem:[#allocation2 + $0xd8] sm:$0xff]
    %v721 = vld [vmem:[#allocation2 + $0xe0] sm:$0xff]
    %v722 = vld [vmem:[#allocation2 + $0xe8] sm:$0xff]
    %v723 = vld [vmem:[#allocation2 + $0xf0] sm:$0xff]
    %v724 = vld [vmem:[#allocation2 + $0xf8] sm:$0xff]
    %v725 = vld [vmem:[#allocation2 + $0x100] sm:$0xff]
    %v726 = vld [vmem:[#allocation2 + $0x108] sm:$0xff]
    %v727 = vld [vmem:[#allocation2 + $0x110] sm:$0xff]
    %v728 = vld [vmem:[#allocation2 + $0x118] sm:$0xff]
    %v729 = vld [vmem:[#allocation2 + $0x120] sm:$0xff]
    %v730 = vld [vmem:[#allocation2 + $0x128] sm:$0xff]
    %v731 = vld [vmem:[#allocation2 + $0x130] sm:$0xff]
    %v732 = vld [vmem:[#allocation2 + $0x138] sm:$0xff]
    %v733 = vld [vmem:[#allocation2 + $0x140] sm:$0xff]
    %v734 = vld [vmem:[#allocation2 + $0x148] sm:$0xff]
    %v735 = vld [vmem:[#allocation2 + $0x150] sm:$0xff]
    %v736 = vld [vmem:[#allocation2 + $0x158] sm:$0xff]
    %v737 = vld [vmem:[#allocation2 + $0x160] sm:$0xff]
    %v738 = vld [vmem:[#allocation2 + $0x168] sm:$0xff]
    %v739 = vld [vmem:[#allocation2 + $0x170] sm:$0xff]
    %v740 = vld [vmem:[#allocation2 + $0x178] sm:$0xff]
    %v741 = vld [vmem:[%s7] sm:$0x1]
    %v743 = vlaneseq
    %v744 = vshrl.u32 %v743, 7
    %v745 = vsub.s32 0, %v744
    %v746 = vrot.slane %v741, %v745
    %748 = vmatprep.subr.mxu0 0.0
    %749 = vmatpush1.msra.mxu0 %v708
    %750 = vmatprep.subr.mxu0 0.0
    %751 = vmatpush1.msra.mxu0 %v707
    %752 = vmatprep.subr.mxu0 0.0
    %753 = vmatpush1.msra.mxu0 %v706
    %754 = vmatprep.subr.mxu0 0.0
    %755 = vmatpush1.msra.mxu0 %v705
    %756 = vmatprep.subr.mxu0 0.0
    %757 = vmatpush1.msra.mxu0 %v704
    %758 = vmatprep.subr.mxu0 0.0
    %759 = vmatpush1.msra.mxu0 %v703
    %760 = vmatprep.subr.mxu0 0.0
    %761 = vmatpush1.msra.mxu0 %v702
    %762 = vmatprep.subr.mxu0 0.0
    %763 = vmatpush1.msra.mxu0 %v701
    %764 = vmatprep.subr.mxu0 0.0
    %765 = vmatpush1.msra.mxu0 %v700
    %766 = vmatprep.subr.mxu0 0.0
    %767 = vmatpush1.msra.mxu0 %v699
    %768 = vmatprep.subr.mxu0 0.0
    %769 = vmatpush1.msra.mxu0 %v698
    %770 = vmatprep.subr.mxu0 0.0
    %771 = vmatpush1.msra.mxu0 %v697
    %772 = vmatprep.subr.mxu0 0.0
    %773 = vmatpush1.msra.mxu0 %v696
    %774 = vmatprep.subr.mxu0 0.0
    %775 = vmatpush1.msra.mxu0 %v695
    %776 = vmatprep.subr.mxu0 0.0
    %777 = vmatpush1.msra.mxu0 %v694
    %778 = vmatprep.subr.mxu0 0.0
    %779 = vmatpush1.msra.mxu0 %v693
    %780 = vmatprep.subr.mxu0 0.0
    %781 = vmatpush2.msra.mxu0 %v724
    %782 = vmatprep.subr.mxu0 0.0
    %783 = vmatpush2.msra.mxu0 %v723
    %784 = vmatprep.subr.mxu0 0.0
    %785 = vmatpush2.msra.mxu0 %v722
    %786 = vmatprep.subr.mxu0 0.0
    %787 = vmatpush2.msra.mxu0 %v721
    %788 = vmatprep.subr.mxu0 0.0
    %789 = vmatpush2.msra.mxu0 %v720
    %790 = vmatprep.subr.mxu0 0.0
    %791 = vmatpush2.msra.mxu0 %v719
    %792 = vmatprep.subr.mxu0 0.0
    %793 = vmatpush2.msra.mxu0 %v718
    %794 = vmatprep.subr.mxu0 0.0
    %795 = vmatpush2.msra.mxu0 %v717
    %796 = vmatprep.subr.mxu0 0.0
    %797 = vmatpush2.msra.mxu0 %v716
    %798 = vmatprep.subr.mxu0 0.0
    %799 = vmatpush2.msra.mxu0 %v715
    %800 = vmatprep.subr.mxu0 0.0
    %801 = vmatpush2.msra.mxu0 %v714
    %802 = vmatprep.subr.mxu0 0.0
    %803 = vmatpush2.msra.mxu0 %v713
    %804 = vmatprep.subr.mxu0 0.0
    %805 = vmatpush2.msra.mxu0 %v712
    %806 = vmatprep.subr.mxu0 0.0
    %807 = vmatpush2.msra.mxu0 %v711
    %808 = vmatprep.subr.mxu0 0.0
    %809 = vmatpush2.msra.mxu0 %v710
    %810 = vmatprep.subr.mxu0 0.0
    %811 = vmatpush2.msra.mxu0 %v709
    %812 = vmatprep.mubr.f32.mxu0 %v609
    %813 = vmatmul.mubr.f32.gmra.mxu0 %v645
    %v814 = vpop.f32.mrf.mxu0
    %v815 = vadd.f32 %v746, %v814
    %v816 = vpop.f32.mrf.mxu0
    %817 = vmatprep.mubr.f32.mxu0 %v610
    %818 = vmatmul.mubr.f32.gmra.mxu0 %v646
    %v819 = vpop.f32.mrf.mxu0
    %v820 = vadd.f32 %v746, %v819
    %v821 = vpop.f32.mrf.mxu0
    %822 = vmatprep.mubr.f32.mxu0 %v611
    %823 = vmatmul.mubr.f32.gmra.mxu0 %v647
    %v824 = vpop.f32.mrf.mxu0
    %v825 = vadd.f32 %v746, %v824
    %v826 = vpop.f32.mrf.mxu0
    %827 = vmatprep.mubr.f32.mxu0 %v612
    %828 = vmatmul.mubr.f32.gmra.mxu0 %v648
    %v829 = vpop.f32.mrf.mxu0
    %v830 = vadd.f32 %v746, %v829
    %v831 = vpop.f32.mrf.mxu0
    %832 = vmatprep.mubr.f32.mxu0 %v613
    %833 = vmatmul.mubr.f32.gmra.mxu0 %v649
    %v834 = vpop.f32.mrf.mxu0
    %v835 = vadd.f32 %v746, %v834
    %v836 = vpop.f32.mrf.mxu0
    %837 = vmatprep.mubr.f32.mxu0 %v614
    %838 = vmatmul.mubr.f32.gmra.mxu0 %v650
    %v839 = vpop.f32.mrf.mxu0
    %v840 = vadd.f32 %v746, %v839
    %v841 = vpop.f32.mrf.mxu0
    %842 = vmatprep.mubr.f32.mxu0 %v615
    %843 = vmatmul.mubr.f32.gmra.mxu0 %v651
    %v844 = vpop.f32.mrf.mxu0
    %v845 = vadd.f32 %v746, %v844
    %v846 = vpop.f32.mrf.mxu0
    %847 = vmatprep.mubr.f32.mxu0 %v616
    %848 = vmatmul.mubr.f32.gmra.mxu0 %v652
    %v849 = vpop.f32.mrf.mxu0
    %v850 = vadd.f32 %v746, %v849
    %v851 = vpop.f32.mrf.mxu0
    %852 = vmatprep.mubr.f32.mxu0 %v617
    %853 = vmatmul.mubr.f32.gmra.mxu0 %v653
    %v854 = vpop.f32.mrf.mxu0
    %v855 = vadd.f32 %v746, %v854
    %v856 = vpop.f32.mrf.mxu0
    %857 = vmatprep.mubr.f32.mxu0 %v618
    %858 = vmatmul.mubr.f32.gmra.mxu0 %v654
    %v859 = vpop.f32.mrf.mxu0
    %v860 = vadd.f32 %v746, %v859
    %v861 = vpop.f32.mrf.mxu0
    %862 = vmatprep.mubr.f32.mxu0 %v619
    %863 = vmatmul.mubr.f32.gmra.mxu0 %v655
    %v864 = vpop.f32.mrf.mxu0
    %v865 = vadd.f32 %v746, %v864
    %v866 = vpop.f32.mrf.mxu0
    %867 = vmatprep.mubr.f32.mxu0 %v620
    %868 = vmatmul.mubr.f32.gmra.mxu0 %v656
    %v869 = vpop.f32.mrf.mxu0
    %v870 = vadd.f32 %v746, %v869
    %v871 = vpop.f32.mrf.mxu0
    %872 = vdwg.mxu0
    %873 = vmatprep.subr.mxu0 0.0
    %874 = vmatpush1.msra.mxu0 %v740
    %875 = vmatprep.subr.mxu0 0.0
    %876 = vmatpush1.msra.mxu0 %v739
    %877 = vmatprep.subr.mxu0 0.0
    %878 = vmatpush1.msra.mxu0 %v738
    %879 = vmatprep.subr.mxu0 0.0
    %880 = vmatpush1.msra.mxu0 %v737
    %881 = vmatprep.subr.mxu0 0.0
    %882 = vmatpush1.msra.mxu0 %v736
    %883 = vmatprep.subr.mxu0 0.0
    %884 = vmatpush1.msra.mxu0 %v735
    %885 = vmatprep.subr.mxu0 0.0
    %886 = vmatpush1.msra.mxu0 %v734
    %887 = vmatprep.subr.mxu0 0.0
    %888 = vmatpush1.msra.mxu0 %v733
    %889 = vmatprep.subr.mxu0 0.0
    %890 = vmatpush1.msra.mxu0 %v732
    %891 = vmatprep.subr.mxu0 0.0
    %892 = vmatpush1.msra.mxu0 %v731
    %893 = vmatprep.subr.mxu0 0.0
    %894 = vmatpush1.msra.mxu0 %v730
    %895 = vmatprep.subr.mxu0 0.0
    %896 = vmatpush1.msra.mxu0 %v729
    %897 = vmatprep.subr.mxu0 0.0
    %898 = vmatpush1.msra.mxu0 %v728
    %899 = vmatprep.subr.mxu0 0.0
    %900 = vmatpush1.msra.mxu0 %v727
    %901 = vmatprep.subr.mxu0 0.0
    %902 = vmatpush1.msra.mxu0 %v726
    %903 = vmatprep.subr.mxu0 0.0
    %904 = vmatpush1.msra.mxu0 %v725
    %905 = vmatprep.subr.mxu0 0.0
    %906 = vmatpush2.msra.mxu0 0.0
    %907 = vmatprep.subr.mxu0 0.0
    %908 = vmatpush2.msra.mxu0 0.0
    %909 = vmatprep.subr.mxu0 0.0
    %910 = vmatpush2.msra.mxu0 0.0
    %911 = vmatprep.subr.mxu0 0.0
    %912 = vmatpush2.msra.mxu0 0.0
    %913 = vmatprep.subr.mxu0 0.0
    %914 = vmatpush2.msra.mxu0 0.0
    %915 = vmatprep.subr.mxu0 0.0
    %916 = vmatpush2.msra.mxu0 0.0
    %917 = vmatprep.subr.mxu0 0.0
    %918 = vmatpush2.msra.mxu0 0.0
    %919 = vmatprep.subr.mxu0 0.0
    %920 = vmatpush2.msra.mxu0 0.0
    %921 = vmatprep.subr.mxu0 0.0
    %922 = vmatpush2.msra.mxu0 0.0
    %923 = vmatprep.subr.mxu0 0.0
    %924 = vmatpush2.msra.mxu0 0.0
    %925 = vmatprep.subr.mxu0 0.0
    %926 = vmatpush2.msra.mxu0 0.0
    %927 = vmatprep.subr.mxu0 0.0
    %928 = vmatpush2.msra.mxu0 0.0
    %929 = vmatprep.subr.mxu0 0.0
    %930 = vmatpush2.msra.mxu0 0.0
    %931 = vmatprep.subr.mxu0 0.0
    %932 = vmatpush2.msra.mxu0 0.0
    %933 = vmatprep.subr.mxu0 0.0
    %934 = vmatpush2.msra.mxu0 0.0
    %935 = vmatprep.subr.mxu0 0.0
    %936 = vmatpush2.msra.mxu0 0.0
    %937 = vmatprep.mubr.f32.mxu0 0.0
    %938 = vmatmul.mubr.f32.gmra.mxu0 %v681
    %v939 = vpop.f32.mrf.mxu0
    %v940 = vadd.f32 %v815, %v939
    %v941 = vpop.f32.mrf.mxu0
    %942 = vmatprep.mubr.f32.mxu0 0.0
    %943 = vmatmul.mubr.f32.gmra.mxu0 %v682
    %v944 = vpop.f32.mrf.mxu0
    %v945 = vadd.f32 %v820, %v944
    %v946 = vpop.f32.mrf.mxu0
    %947 = vmatprep.mubr.f32.mxu0 0.0
    %948 = vmatmul.mubr.f32.gmra.mxu0 %v683
    %v949 = vpop.f32.mrf.mxu0
    %v950 = vadd.f32 %v825, %v949
    %v951 = vpop.f32.mrf.mxu0
    %952 = vmatprep.mubr.f32.mxu0 0.0
    %953 = vmatmul.mubr.f32.gmra.mxu0 %v684
    %v954 = vpop.f32.mrf.mxu0
    %v955 = vadd.f32 %v830, %v954
    %v956 = vpop.f32.mrf.mxu0
    %957 = vmatprep.mubr.f32.mxu0 0.0
    %958 = vmatmul.mubr.f32.gmra.mxu0 %v685
    %v959 = vpop.f32.mrf.mxu0
    %v960 = vadd.f32 %v835, %v959
    %v961 = vpop.f32.mrf.mxu0
    %962 = vmatprep.mubr.f32.mxu0 0.0
    %963 = vmatmul.mubr.f32.gmra.mxu0 %v686
    %v964 = vpop.f32.mrf.mxu0
    %v965 = vadd.f32 %v840, %v964
    %v966 = vpop.f32.mrf.mxu0
    %967 = vmatprep.mubr.f32.mxu0 0.0
    %968 = vmatmul.mubr.f32.gmra.mxu0 %v687
    %v969 = vpop.f32.mrf.mxu0
    %v970 = vadd.f32 %v845, %v969
    %v971 = vpop.f32.mrf.mxu0
    %972 = vmatprep.mubr.f32.mxu0 0.0
    %973 = vmatmul.mubr.f32.gmra.mxu0 %v688
    %v974 = vpop.f32.mrf.mxu0
    %v975 = vadd.f32 %v850, %v974
    %v976 = vpop.f32.mrf.mxu0
    %977 = vmatprep.mubr.f32.mxu0 0.0
    %978 = vmatmul.mubr.f32.gmra.mxu0 %v689
    %v979 = vpop.f32.mrf.mxu0
    %v980 = vadd.f32 %v855, %v979
    %v981 = vpop.f32.mrf.mxu0
    %982 = vmatprep.mubr.f32.mxu0 0.0
    %983 = vmatmul.mubr.f32.gmra.mxu0 %v690
    %v984 = vpop.f32.mrf.mxu0
    %v985 = vadd.f32 %v860, %v984
    %v986 = vpop.f32.mrf.mxu0
    %987 = vmatprep.mubr.f32.mxu0 0.0
    %988 = vmatmul.mubr.f32.gmra.mxu0 %v691
    %v989 = vpop.f32.mrf.mxu0
    %v990 = vadd.f32 %v865, %v989
    %v991 = vpop.f32.mrf.mxu0
    %992 = vmatprep.mubr.f32.mxu0 0.0
    %993 = vmatmul.mubr.f32.gmra.mxu0 %v692
    %v994 = vpop.f32.mrf.mxu0
    %v995 = vadd.f32 %v870, %v994
    %v996 = vpop.f32.mrf.mxu0
    %997 = vdwg.mxu0
    %vm998 = vcmp.ge.f32.partialorder %v940, 0.0
    %vm999 = vcmp.ge.f32.partialorder %v945, 0.0
    %vm1000 = vcmp.ge.f32.partialorder %v950, 0.0
    %vm1001 = vcmp.ge.f32.partialorder %v955, 0.0
    %vm1002 = vcmp.ge.f32.partialorder %v960, 0.0
    %vm1003 = vcmp.ge.f32.partialorder %v965, 0.0
    %vm1004 = vcmp.ge.f32.partialorder %v970, 0.0
    %vm1005 = vcmp.ge.f32.partialorder %v975, 0.0
    %vm1006 = vcmp.ge.f32.partialorder %v980, 0.0
    %vm1007 = vcmp.ge.f32.partialorder %v985, 0.0
    %vm1008 = vcmp.ge.f32.partialorder %v990, 0.0
    %vm1009 = vcmp.ge.f32.partialorder %v995, 0.0
    %v1010 = vstv %s64
    %v1011 = vmul.f32 %v1010, %v940
    %v1012 = vmul.f32 %v1010, %v945
    %v1013 = vmul.f32 %v1010, %v950
    %v1014 = vmul.f32 %v1010, %v955
    %v1015 = vmul.f32 %v1010, %v960
    %v1016 = vmul.f32 %v1010, %v965
    %v1017 = vmul.f32 %v1010, %v970
    %v1018 = vmul.f32 %v1010, %v975
    %v1019 = vmul.f32 %v1010, %v980
    %v1020 = vmul.f32 %v1010, %v985
    %v1021 = vmul.f32 %v1010, %v990
    %v1022 = vmul.f32 %v1010, %v995
    %v1023 = vsel %vm998, %v940, %v1011
    %v1024 = vsel %vm999, %v945, %v1012
    %v1025 = vsel %vm1000, %v950, %v1013
    %v1026 = vsel %vm1001, %v955, %v1014
    %v1027 = vsel %vm1002, %v960, %v1015
    %v1028 = vsel %vm1003, %v965, %v1016
    %v1029 = vsel %vm1004, %v970, %v1017
    %v1030 = vsel %vm1005, %v975, %v1018
    %v1031 = vsel %vm1006, %v980, %v1019
    %v1032 = vsel %vm1007, %v985, %v1020
    %v1033 = vsel %vm1008, %v990, %v1021
    %v1034 = vsel %vm1009, %v995, %v1022
    %v1035 = vadd.f32 %v144, %v1023
    %v1036 = vadd.f32 %v145, %v1024
    %v1037 = vadd.f32 %v146, %v1025
    %v1038 = vadd.f32 %v147, %v1026
    %v1039 = vadd.f32 %v148, %v1027
    %v1040 = vadd.f32 %v149, %v1028
    %v1041 = vadd.f32 %v150, %v1029
    %v1042 = vadd.f32 %v151, %v1030
    %v1043 = vadd.f32 %v152, %v1031
    %v1044 = vadd.f32 %v153, %v1032
    %v1045 = vadd.f32 %v154, %v1033
    %v1046 = vadd.f32 %v155, %v1034
    %v1047 = vrot.slane %v1035, 7
    %v1048 = vrot.slane %v1036, 7
    %v1049 = vrot.slane %v1037, 7
    %v1050 = vrot.slane %v1038, 7
    %v1051 = vrot.slane %v1039, 7
    %v1052 = vrot.slane %v1040, 7
    %v1053 = vrot.slane %v1041, 7
    %v1054 = vrot.slane %v1042, 7
    %v1055 = vrot.slane %v1043, 7
    %v1056 = vrot.slane %v1044, 7
    %v1057 = vrot.slane %v1045, 7
    %v1058 = vrot.slane %v1046, 7
    %v1059 = vsel %vm217, %v1057, %v1058
    %v1060 = vsel %vm217, %v1056, %v1057
    %v1061 = vsel %vm217, %v1055, %v1056
    %v1062 = vsel %vm217, %v1054, %v1055
    %v1063 = vsel %vm217, %v1053, %v1054
    %v1064 = vsel %vm217, %v1052, %v1053
    %v1065 = vsel %vm217, %v1051, %v1052
    %v1066 = vsel %vm217, %v1050, %v1051
    %v1067 = vsel %vm217, %v1049, %v1050
    %v1068 = vsel %vm217, %v1048, %v1049
    %v1069 = vsel %vm217, %v1047, %v1048
    %v1070 = vsel %vm217, %v1058, %v1047
    %v1071 = vsel %vm181, 0.0, %v1070
    %v1072 = vsel %vm182, 0.0, %v1069
    %v1073 = vsel %vm183, 0.0, %v1068
    %v1074 = vsel %vm184, 0.0, %v1067
    %v1075 = vsel %vm185, 0.0, %v1066
    %v1076 = vsel %vm186, 0.0, %v1065
    %v1077 = vsel %vm187, 0.0, %v1064
    %v1078 = vsel %vm188, 0.0, %v1063
    %v1079 = vsel %vm189, 0.0, %v1062
    %v1080 = vsel %vm190, 0.0, %v1061
    %v1081 = vsel %vm191, 0.0, %v1060
    %v1082 = vsel %vm192, 0.0, %v1059
    %v1083 = vrot.slane %v1035, 1
    %v1084 = vrot.slane %v1036, 1
    %v1085 = vrot.slane %v1037, 1
    %v1086 = vrot.slane %v1038, 1
    %v1087 = vrot.slane %v1039, 1
    %v1088 = vrot.slane %v1040, 1
    %v1089 = vrot.slane %v1041, 1
    %v1090 = vrot.slane %v1042, 1
    %v1091 = vrot.slane %v1043, 1
    %v1092 = vrot.slane %v1044, 1
    %v1093 = vrot.slane %v1045, 1
    %v1094 = vrot.slane %v1046, 1
    %v1095 = vsel %vm254, %v1093, %v1094
    %v1096 = vsel %vm254, %v1092, %v1093
    %v1097 = vsel %vm254, %v1091, %v1092
    %v1098 = vsel %vm254, %v1090, %v1091
    %v1099 = vsel %vm254, %v1089, %v1090
    %v1100 = vsel %vm254, %v1088, %v1089
    %v1101 = vsel %vm254, %v1087, %v1088
    %v1102 = vsel %vm254, %v1086, %v1087
    %v1103 = vsel %vm254, %v1085, %v1086
    %v1104 = vsel %vm254, %v1084, %v1085
    %v1105 = vsel %vm254, %v1083, %v1084
    %v1106 = vsel %vm254, %v1094, %v1083
    %v1107 = vsel %vm193, 0.0, %v1105
    %v1108 = vsel %vm194, 0.0, %v1104
    %v1109 = vsel %vm195, 0.0, %v1103
    %v1110 = vsel %vm196, 0.0, %v1102
    %v1111 = vsel %vm197, 0.0, %v1101
    %v1112 = vsel %vm198, 0.0, %v1100
    %v1113 = vsel %vm199, 0.0, %v1099
    %v1114 = vsel %vm200, 0.0, %v1098
    %v1115 = vsel %vm201, 0.0, %v1097
    %v1116 = vsel %vm202, 0.0, %v1096
    %v1117 = vsel %vm203, 0.0, %v1095
    %v1118 = vsel %vm204, 0.0, %v1106
    %v1119 = vld [vmem:[%s5] sm:$0xff]
    %v1120 = vld [vmem:[%s5 + $0x8] sm:$0xff]
    %v1121 = vld [vmem:[%s5 + $0x10] sm:$0xff]
    %v1122 = vld [vmem:[%s5 + $0x18] sm:$0xff]
    %v1123 = vld [vmem:[%s5 + $0x20] sm:$0xff]
    %v1124 = vld [vmem:[%s5 + $0x28] sm:$0xff]
    %v1125 = vld [vmem:[%s5 + $0x30] sm:$0xff]
    %v1126 = vld [vmem:[%s5 + $0x38] sm:$0xff]
    %v1127 = vld [vmem:[%s5 + $0x40] sm:$0xff]
    %v1128 = vld [vmem:[%s5 + $0x48] sm:$0xff]
    %v1129 = vld [vmem:[%s5 + $0x50] sm:$0xff]
    %v1130 = vld [vmem:[%s5 + $0x58] sm:$0xff]
    %v1131 = vld [vmem:[%s5 + $0x60] sm:$0xff]
    %v1132 = vld [vmem:[%s5 + $0x68] sm:$0xff]
    %v1133 = vld [vmem:[%s5 + $0x70] sm:$0xff]
    %v1134 = vld [vmem:[%s5 + $0x78] sm:$0xff]
    %v1135 = vld [vmem:[%s5 + $0x80] sm:$0xff]
    %v1136 = vld [vmem:[%s5 + $0x88] sm:$0xff]
    %v1137 = vld [vmem:[%s5 + $0x90] sm:$0xff]
    %v1138 = vld [vmem:[%s5 + $0x98] sm:$0xff]
    %v1139 = vld [vmem:[%s5 + $0xa0] sm:$0xff]
    %v1140 = vld [vmem:[%s5 + $0xa8] sm:$0xff]
    %v1141 = vld [vmem:[%s5 + $0xb0] sm:$0xff]
    %v1142 = vld [vmem:[%s5 + $0xb8] sm:$0xff]
    %v1143 = vld [vmem:[%s5 + $0xc0] sm:$0xff]
    %v1144 = vld [vmem:[%s5 + $0xc8] sm:$0xff]
    %v1145 = vld [vmem:[%s5 + $0xd0] sm:$0xff]
    %v1146 = vld [vmem:[%s5 + $0xd8] sm:$0xff]
    %v1147 = vld [vmem:[%s5 + $0xe0] sm:$0xff]
    %v1148 = vld [vmem:[%s5 + $0xe8] sm:$0xff]
    %v1149 = vld [vmem:[%s5 + $0xf0] sm:$0xff]
    %v1150 = vld [vmem:[%s5 + $0xf8] sm:$0xff]
    %v1151 = vld [vmem:[%s5 + $0x100] sm:$0xff]
    %v1152 = vld [vmem:[%s5 + $0x108] sm:$0xff]
    %v1153 = vld [vmem:[%s5 + $0x110] sm:$0xff]
    %v1154 = vld [vmem:[%s5 + $0x118] sm:$0xff]
    %v1155 = vld [vmem:[%s5 + $0x120] sm:$0xff]
    %v1156 = vld [vmem:[%s5 + $0x128] sm:$0xff]
    %v1157 = vld [vmem:[%s5 + $0x130] sm:$0xff]
    %v1158 = vld [vmem:[%s5 + $0x138] sm:$0xff]
    %v1159 = vld [vmem:[%s5 + $0x140] sm:$0xff]
    %v1160 = vld [vmem:[%s5 + $0x148] sm:$0xff]
    %v1161 = vld [vmem:[%s5 + $0x150] sm:$0xff]
    %v1162 = vld [vmem:[%s5 + $0x158] sm:$0xff]
    %v1163 = vld [vmem:[%s5 + $0x160] sm:$0xff]
    %v1164 = vld [vmem:[%s5 + $0x168] sm:$0xff]
    %v1165 = vld [vmem:[%s5 + $0x170] sm:$0xff]
    %v1166 = vld [vmem:[%s5 + $0x178] sm:$0xff]
    %v1167 = vld [vmem:[%s8] sm:$0x1]
    %v1169 = vlaneseq
    %v1170 = vshrl.u32 %v1169, 7
    %v1171 = vsub.s32 0, %v1170
    %v1172 = vrot.slane %v1167, %v1171
    %1174 = vmatprep.subr.mxu0 0.0
    %1175 = vmatpush1.msra.mxu0 %v1134
    %1176 = vmatprep.subr.mxu0 0.0
    %1177 = vmatpush1.msra.mxu0 %v1133
    %1178 = vmatprep.subr.mxu0 0.0
    %1179 = vmatpush1.msra.mxu0 %v1132
    %1180 = vmatprep.subr.mxu0 0.0
    %1181 = vmatpush1.msra.mxu0 %v1131
    %1182 = vmatprep.subr.mxu0 0.0
    %1183 = vmatpush1.msra.mxu0 %v1130
    %1184 = vmatprep.subr.mxu0 0.0
    %1185 = vmatpush1.msra.mxu0 %v1129
    %1186 = vmatprep.subr.mxu0 0.0
    %1187 = vmatpush1.msra.mxu0 %v1128
    %1188 = vmatprep.subr.mxu0 0.0
    %1189 = vmatpush1.msra.mxu0 %v1127
    %1190 = vmatprep.subr.mxu0 0.0
    %1191 = vmatpush1.msra.mxu0 %v1126
    %1192 = vmatprep.subr.mxu0 0.0
    %1193 = vmatpush1.msra.mxu0 %v1125
    %1194 = vmatprep.subr.mxu0 0.0
    %1195 = vmatpush1.msra.mxu0 %v1124
    %1196 = vmatprep.subr.mxu0 0.0
    %1197 = vmatpush1.msra.mxu0 %v1123
    %1198 = vmatprep.subr.mxu0 0.0
    %1199 = vmatpush1.msra.mxu0 %v1122
    %1200 = vmatprep.subr.mxu0 0.0
    %1201 = vmatpush1.msra.mxu0 %v1121
    %1202 = vmatprep.subr.mxu0 0.0
    %1203 = vmatpush1.msra.mxu0 %v1120
    %1204 = vmatprep.subr.mxu0 0.0
    %1205 = vmatpush1.msra.mxu0 %v1119
    %1206 = vmatprep.subr.mxu0 0.0
    %1207 = vmatpush2.msra.mxu0 %v1150
    %1208 = vmatprep.subr.mxu0 0.0
    %1209 = vmatpush2.msra.mxu0 %v1149
    %1210 = vmatprep.subr.mxu0 0.0
    %1211 = vmatpush2.msra.mxu0 %v1148
    %1212 = vmatprep.subr.mxu0 0.0
    %1213 = vmatpush2.msra.mxu0 %v1147
    %1214 = vmatprep.subr.mxu0 0.0
    %1215 = vmatpush2.msra.mxu0 %v1146
    %1216 = vmatprep.subr.mxu0 0.0
    %1217 = vmatpush2.msra.mxu0 %v1145
    %1218 = vmatprep.subr.mxu0 0.0
    %1219 = vmatpush2.msra.mxu0 %v1144
    %1220 = vmatprep.subr.mxu0 0.0
    %1221 = vmatpush2.msra.mxu0 %v1143
    %1222 = vmatprep.subr.mxu0 0.0
    %1223 = vmatpush2.msra.mxu0 %v1142
    %1224 = vmatprep.subr.mxu0 0.0
    %1225 = vmatpush2.msra.mxu0 %v1141
    %1226 = vmatprep.subr.mxu0 0.0
    %1227 = vmatpush2.msra.mxu0 %v1140
    %1228 = vmatprep.subr.mxu0 0.0
    %1229 = vmatpush2.msra.mxu0 %v1139
    %1230 = vmatprep.subr.mxu0 0.0
    %1231 = vmatpush2.msra.mxu0 %v1138
    %1232 = vmatprep.subr.mxu0 0.0
    %1233 = vmatpush2.msra.mxu0 %v1137
    %1234 = vmatprep.subr.mxu0 0.0
    %1235 = vmatpush2.msra.mxu0 %v1136
    %1236 = vmatprep.subr.mxu0 0.0
    %1237 = vmatpush2.msra.mxu0 %v1135
    %1238 = vmatprep.mubr.f32.mxu0 %v1035
    %1239 = vmatmul.mubr.f32.gmra.mxu0 %v1071
    %v1240 = vpop.f32.mrf.mxu0
    %v1241 = vadd.f32 %v1172, %v1240
    %v1242 = vpop.f32.mrf.mxu0
    %1243 = vmatprep.mubr.f32.mxu0 %v1036
    %1244 = vmatmul.mubr.f32.gmra.mxu0 %v1072
    %v1245 = vpop.f32.mrf.mxu0
    %v1246 = vadd.f32 %v1172, %v1245
    %v1247 = vpop.f32.mrf.mxu0
    %1248 = vmatprep.mubr.f32.mxu0 %v1037
    %1249 = vmatmul.mubr.f32.gmra.mxu0 %v1073
    %v1250 = vpop.f32.mrf.mxu0
    %v1251 = vadd.f32 %v1172, %v1250
    %v1252 = vpop.f32.mrf.mxu0
    %1253 = vmatprep.mubr.f32.mxu0 %v1038
    %1254 = vmatmul.mubr.f32.gmra.mxu0 %v1074
    %v1255 = vpop.f32.mrf.mxu0
    %v1256 = vadd.f32 %v1172, %v1255
    %v1257 = vpop.f32.mrf.mxu0
    %1258 = vmatprep.mubr.f32.mxu0 %v1039
    %1259 = vmatmul.mubr.f32.gmra.mxu0 %v1075
    %v1260 = vpop.f32.mrf.mxu0
    %v1261 = vadd.f32 %v1172, %v1260
    %v1262 = vpop.f32.mrf.mxu0
    %1263 = vmatprep.mubr.f32.mxu0 %v1040
    %1264 = vmatmul.mubr.f32.gmra.mxu0 %v1076
    %v1265 = vpop.f32.mrf.mxu0
    %v1266 = vadd.f32 %v1172, %v1265
    %v1267 = vpop.f32.mrf.mxu0
    %1268 = vmatprep.mubr.f32.mxu0 %v1041
    %1269 = vmatmul.mubr.f32.gmra.mxu0 %v1077
    %v1270 = vpop.f32.mrf.mxu0
    %v1271 = vadd.f32 %v1172, %v1270
    %v1272 = vpop.f32.mrf.mxu0
    %1273 = vmatprep.mubr.f32.mxu0 %v1042
    %1274 = vmatmul.mubr.f32.gmra.mxu0 %v1078
    %v1275 = vpop.f32.mrf.mxu0
    %v1276 = vadd.f32 %v1172, %v1275
    %v1277 = vpop.f32.mrf.mxu0
    %1278 = vmatprep.mubr.f32.mxu0 %v1043
    %1279 = vmatmul.mubr.f32.gmra.mxu0 %v1079
    %v1280 = vpop.f32.mrf.mxu0
    %v1281 = vpop.f32.mrf.mxu0
    %1282 = vmatprep.mubr.f32.mxu0 %v1044
    %1283 = vmatmul.mubr.f32.gmra.mxu0 %v1080
    %v1284 = vpop.f32.mrf.mxu0
    %v1285 = vpop.f32.mrf.mxu0
    %1286 = vmatprep.mubr.f32.mxu0 %v1045
    %1287 = vmatmul.mubr.f32.gmra.mxu0 %v1081
    %v1288 = vpop.f32.mrf.mxu0
    %v1289 = vpop.f32.mrf.mxu0
    %1290 = vmatprep.mubr.f32.mxu0 %v1046
    %1291 = vmatmul.mubr.f32.gmra.mxu0 %v1082
    %v1292 = vpop.f32.mrf.mxu0
    %v1293 = vpop.f32.mrf.mxu0
    %1294 = vdwg.mxu0
    %1295 = vmatprep.subr.mxu0 0.0
    %1296 = vmatpush1.msra.mxu0 %v1166
    %1297 = vmatprep.subr.mxu0 0.0
    %1298 = vmatpush1.msra.mxu0 %v1165
    %1299 = vmatprep.subr.mxu0 0.0
    %1300 = vmatpush1.msra.mxu0 %v1164
    %1301 = vmatprep.subr.mxu0 0.0
    %1302 = vmatpush1.msra.mxu0 %v1163
    %1303 = vmatprep.subr.mxu0 0.0
    %1304 = vmatpush1.msra.mxu0 %v1162
    %1305 = vmatprep.subr.mxu0 0.0
    %1306 = vmatpush1.msra.mxu0 %v1161
    %1307 = vmatprep.subr.mxu0 0.0
    %1308 = vmatpush1.msra.mxu0 %v1160
    %1309 = vmatprep.subr.mxu0 0.0
    %1310 = vmatpush1.msra.mxu0 %v1159
    %1311 = vmatprep.subr.mxu0 0.0
    %1312 = vmatpush1.msra.mxu0 %v1158
    %1313 = vmatprep.subr.mxu0 0.0
    %1314 = vmatpush1.msra.mxu0 %v1157
    %1315 = vmatprep.subr.mxu0 0.0
    %1316 = vmatpush1.msra.mxu0 %v1156
    %1317 = vmatprep.subr.mxu0 0.0
    %1318 = vmatpush1.msra.mxu0 %v1155
    %1319 = vmatprep.subr.mxu0 0.0
    %1320 = vmatpush1.msra.mxu0 %v1154
    %1321 = vmatprep.subr.mxu0 0.0
    %1322 = vmatpush1.msra.mxu0 %v1153
    %1323 = vmatprep.subr.mxu0 0.0
    %1324 = vmatpush1.msra.mxu0 %v1152
    %1325 = vmatprep.subr.mxu0 0.0
    %1326 = vmatpush1.msra.mxu0 %v1151
    %1327 = vmatprep.subr.mxu0 0.0
    %1328 = vmatpush2.msra.mxu0 0.0
    %1329 = vmatprep.subr.mxu0 0.0
    %1330 = vmatpush2.msra.mxu0 0.0
    %1331 = vmatprep.subr.mxu0 0.0
    %1332 = vmatpush2.msra.mxu0 0.0
    %1333 = vmatprep.subr.mxu0 0.0
    %1334 = vmatpush2.msra.mxu0 0.0
    %1335 = vmatprep.subr.mxu0 0.0
    %1336 = vmatpush2.msra.mxu0 0.0
    %1337 = vmatprep.subr.mxu0 0.0
    %1338 = vmatpush2.msra.mxu0 0.0
    %1339 = vmatprep.subr.mxu0 0.0
    %1340 = vmatpush2.msra.mxu0 0.0
    %1341 = vmatprep.subr.mxu0 0.0
    %1342 = vmatpush2.msra.mxu0 0.0
    %1343 = vmatprep.subr.mxu0 0.0
    %1344 = vmatpush2.msra.mxu0 0.0
    %1345 = vmatprep.subr.mxu0 0.0
    %1346 = vmatpush2.msra.mxu0 0.0
    %1347 = vmatprep.subr.mxu0 0.0
    %1348 = vmatpush2.msra.mxu0 0.0
    %1349 = vmatprep.subr.mxu0 0.0
    %1350 = vmatpush2.msra.mxu0 0.0
    %1351 = vmatprep.subr.mxu0 0.0
    %1352 = vmatpush2.msra.mxu0 0.0
    %1353 = vmatprep.subr.mxu0 0.0
    %1354 = vmatpush2.msra.mxu0 0.0
    %1355 = vmatprep.subr.mxu0 0.0
    %1356 = vmatpush2.msra.mxu0 0.0
    %1357 = vmatprep.subr.mxu0 0.0
    %1358 = vmatpush2.msra.mxu0 0.0
    %1359 = vmatprep.mubr.f32.mxu0 0.0
    %1360 = vmatmul.mubr.f32.gmra.mxu0 %v1107
    %v1361 = vpop.f32.mrf.mxu0
    %v1362 = vadd.f32 %v1241, %v1361
    %v1363 = vpop.f32.mrf.mxu0
    %1364 = vmatprep.mubr.f32.mxu0 0.0
    %1365 = vmatmul.mubr.f32.gmra.mxu0 %v1108
    %v1366 = vpop.f32.mrf.mxu0
    %v1367 = vadd.f32 %v1246, %v1366
    %v1368 = vpop.f32.mrf.mxu0
    %1369 = vmatprep.mubr.f32.mxu0 0.0
    %1370 = vmatmul.mubr.f32.gmra.mxu0 %v1109
    %v1371 = vpop.f32.mrf.mxu0
    %v1372 = vadd.f32 %v1251, %v1371
    %v1373 = vpop.f32.mrf.mxu0
    %1374 = vmatprep.mubr.f32.mxu0 0.0
    %1375 = vmatmul.mubr.f32.gmra.mxu0 %v1110
    %v1376 = vpop.f32.mrf.mxu0
    %v1377 = vadd.f32 %v1256, %v1376
    %v1378 = vpop.f32.mrf.mxu0
    %1379 = vmatprep.mubr.f32.mxu0 0.0
    %1380 = vmatmul.mubr.f32.gmra.mxu0 %v1111
    %v1381 = vpop.f32.mrf.mxu0
    %v1382 = vadd.f32 %v1261, %v1381
    %v1383 = vpop.f32.mrf.mxu0
    %1384 = vmatprep.mubr.f32.mxu0 0.0
    %1385 = vmatmul.mubr.f32.gmra.mxu0 %v1112
    %v1386 = vpop.f32.mrf.mxu0
    %v1387 = vadd.f32 %v1266, %v1386
    %v1388 = vpop.f32.mrf.mxu0
    %1389 = vmatprep.mubr.f32.mxu0 0.0
    %1390 = vmatmul.mubr.f32.gmra.mxu0 %v1113
    %v1391 = vpop.f32.mrf.mxu0
    %v1392 = vadd.f32 %v1271, %v1391
    %v1393 = vpop.f32.mrf.mxu0
    %1394 = vmatprep.mubr.f32.mxu0 0.0
    %1395 = vmatmul.mubr.f32.gmra.mxu0 %v1114
    %v1396 = vpop.f32.mrf.mxu0
    %v1397 = vadd.f32 %v1276, %v1396
    %v1398 = vpop.f32.mrf.mxu0
    %1399 = vmatprep.mubr.f32.mxu0 0.0
    %1400 = vmatmul.mubr.f32.gmra.mxu0 %v1115
    %v1401 = vpop.f32.mrf.mxu0
    %v1402 = vpop.f32.mrf.mxu0
    %1403 = vmatprep.mubr.f32.mxu0 0.0
    %1404 = vmatmul.mubr.f32.gmra.mxu0 %v1116
    %v1405 = vpop.f32.mrf.mxu0
    %v1406 = vpop.f32.mrf.mxu0
    %1407 = vmatprep.mubr.f32.mxu0 0.0
    %1408 = vmatmul.mubr.f32.gmra.mxu0 %v1117
    %v1409 = vpop.f32.mrf.mxu0
    %v1410 = vpop.f32.mrf.mxu0
    %1411 = vmatprep.mubr.f32.mxu0 0.0
    %1412 = vmatmul.mubr.f32.gmra.mxu0 %v1118
    %v1413 = vpop.f32.mrf.mxu0
    %v1414 = vpop.f32.mrf.mxu0
    %1415 = vdwg.mxu0
    %vm1416 = vcmp.ge.f32.partialorder %v1362, 0.0
    %vm1417 = vcmp.ge.f32.partialorder %v1367, 0.0
    %vm1418 = vcmp.ge.f32.partialorder %v1372, 0.0
    %vm1419 = vcmp.ge.f32.partialorder %v1377, 0.0
    %vm1420 = vcmp.ge.f32.partialorder %v1382, 0.0
    %vm1421 = vcmp.ge.f32.partialorder %v1387, 0.0
    %vm1422 = vcmp.ge.f32.partialorder %v1392, 0.0
    %vm1423 = vcmp.ge.f32.partialorder %v1397, 0.0
    %v1424 = vstv %s65
    %v1425 = vmul.f32 %v1424, %v1362
    %v1426 = vmul.f32 %v1424, %v1367
    %v1427 = vmul.f32 %v1424, %v1372
    %v1428 = vmul.f32 %v1424, %v1377
    %v1429 = vmul.f32 %v1424, %v1382
    %v1430 = vmul.f32 %v1424, %v1387
    %v1431 = vmul.f32 %v1424, %v1392
    %v1432 = vmul.f32 %v1424, %v1397
    %v1433 = vsel %vm1416, %v1362, %v1425
    %v1434 = vsel %vm1417, %v1367, %v1426
    %v1435 = vsel %vm1418, %v1372, %v1427
    %v1436 = vsel %vm1419, %v1377, %v1428
    %v1437 = vsel %vm1420, %v1382, %v1429
    %v1438 = vsel %vm1421, %v1387, %v1430
    %v1439 = vsel %vm1422, %v1392, %v1431
    %v1440 = vsel %vm1423, %v1397, %v1432
    %v1441 = vld [vmem:[%s1] sm:$0xff]
    %v1442 = vld [vmem:[%s1 + $0x8] sm:$0xff]
    %v1443 = vld [vmem:[%s1 + $0x10] sm:$0xff]
    %v1444 = vld [vmem:[%s1 + $0x18] sm:$0xff]
    %v1445 = vld [vmem:[%s1 + $0x20] sm:$0xff]
    %v1446 = vld [vmem:[%s1 + $0x28] sm:$0xff]
    %v1447 = vld [vmem:[%s1 + $0x30] sm:$0xff]
    %v1448 = vld [vmem:[%s1 + $0x38] sm:$0xff]
    %1450 = vset.pattern.permute.xlu0 0
    %1451 = vperm.xlu0 %1450, %v1441
    %v1452 = vpop.permute.xlu0 %1451
    %1455 = vset.pattern.permute.xlu0 0
    %1456 = vperm.xlu0 %1455, %v1442
    %v1457 = vpop.permute.xlu0 %1456
    %1460 = vset.pattern.permute.xlu0 0
    %1461 = vperm.xlu0 %1460, %v1443
    %v1462 = vpop.permute.xlu0 %1461
    %1465 = vset.pattern.permute.xlu0 0
    %1466 = vperm.xlu0 %1465, %v1444
    %v1467 = vpop.permute.xlu0 %1466
    %1470 = vset.pattern.permute.xlu0 0
    %1471 = vperm.xlu0 %1470, %v1445
    %v1472 = vpop.permute.xlu0 %1471
    %1475 = vset.pattern.permute.xlu0 0
    %1476 = vperm.xlu0 %1475, %v1446
    %v1477 = vpop.permute.xlu0 %1476
    %1480 = vset.pattern.permute.xlu0 0
    %1481 = vperm.xlu0 %1480, %v1447
    %v1482 = vpop.permute.xlu0 %1481
    %1485 = vset.pattern.permute.xlu0 0
    %1486 = vperm.xlu0 %1485, %v1448
    %v1487 = vpop.permute.xlu0 %1486
    %v1489 = vmul.f32 %v1452, %v1433
    %v1490 = vmul.f32 %v1457, %v1434
    %v1491 = vmul.f32 %v1462, %v1435
    %v1492 = vmul.f32 %v1467, %v1436
    %v1493 = vmul.f32 %v1472, %v1437
    %v1494 = vmul.f32 %v1477, %v1438
    %v1495 = vmul.f32 %v1482, %v1439
    %v1496 = vmul.f32 %v1487, %v1440
    %v1497 = vadd.f32 %v66, %v1489
    %v1498 = vadd.f32 %v67, %v1490
    %v1499 = vadd.f32 %v68, %v1491
    %v1500 = vadd.f32 %v69, %v1492
    %v1501 = vadd.f32 %v71, %v1493
    %v1502 = vadd.f32 %v72, %v1494
    %v1503 = vadd.f32 %v73, %v1495
    %v1504 = vadd.f32 %v74, %v1496
    %1509 = vrot.lane.b32.xlu0 %v1501, 64
    %v1510 = vpop.permute.xlu0 %1509
    %1511 = vrot.lane.b32.xlu0 %v1502, 64
    %v1512 = vpop.permute.xlu0 %1511
    %1513 = vrot.lane.b32.xlu0 %v1503, 64
    %v1514 = vpop.permute.xlu0 %1513
    %1515 = vrot.lane.b32.xlu0 %v1504, 64
    %v1516 = vpop.permute.xlu0 %1515
    %v1521 = vsel %vm143, %v1497, %v1510
    %v1522 = vsel %vm143, %v1498, %v1512
    %v1523 = vsel %vm143, %v1499, %v1514
    %v1524 = vsel %vm143, %v1500, %v1516
    %v1525 = vrot.slane %v1521, 7
    %v1526 = vrot.slane %v1522, 7
    %v1527 = vrot.slane %v1523, 7
    %v1528 = vrot.slane %v1524, 7
    %v1529 = vsel %vm217, %v1527, %v1528
    %v1530 = vsel %vm217, %v1526, %v1527
    %v1531 = vsel %vm217, %v1525, %v1526
    %v1532 = vsel %vm217, %v1528, %v1525
    %v1533 = vsel %vm181, 0.0, %v1532
    %v1534 = vsel %vm182, 0.0, %v1531
    %v1535 = vsel %vm183, 0.0, %v1530
    %v1536 = vsel %vm184, 0.0, %v1529
    %v1537 = vrot.slane %v1521, 1
    %v1538 = vrot.slane %v1522, 1
    %v1539 = vrot.slane %v1523, 1
    %v1540 = vrot.slane %v1524, 1
    %v1541 = vsel %vm254, %v1539, %v1540
    %v1542 = vsel %vm254, %v1538, %v1539
    %v1543 = vsel %vm254, %v1537, %v1538
    %v1544 = vsel %vm254, %v1540, %v1537
    %v1545 = vsel %vm193, 0.0, %v1543
    %v1546 = vsel %vm194, 0.0, %v1542
    %v1547 = vsel %vm195, 0.0, %v1541
    %v1548 = vsel %vm196, 0.0, %v1544
    %1549 = vmatprep.subr.mxu0 0.0
    %1550 = vmatpush1.msra.mxu0 %v294
    %1551 = vmatprep.subr.mxu0 0.0
    %1552 = vmatpush1.msra.mxu0 %v293
    %1553 = vmatprep.subr.mxu0 0.0
    %1554 = vmatpush1.msra.mxu0 %v292
    %1555 = vmatprep.subr.mxu0 0.0
    %1556 = vmatpush1.msra.mxu0 %v291
    %1557 = vmatprep.subr.mxu0 0.0
    %1558 = vmatpush1.msra.mxu0 %v290
    %1559 = vmatprep.subr.mxu0 0.0
    %1560 = vmatpush1.msra.mxu0 %v289
    %1561 = vmatprep.subr.mxu0 0.0
    %1562 = vmatpush1.msra.mxu0 %v288
    %1563 = vmatprep.subr.mxu0 0.0
    %1564 = vmatpush1.msra.mxu0 %v287
    %1565 = vmatprep.subr.mxu0 0.0
    %1566 = vmatpush1.msra.mxu0 %v286
    %1567 = vmatprep.subr.mxu0 0.0
    %1568 = vmatpush1.msra.mxu0 %v285
    %1569 = vmatprep.subr.mxu0 0.0
    %1570 = vmatpush1.msra.mxu0 %v284
    %1571 = vmatprep.subr.mxu0 0.0
    %1572 = vmatpush1.msra.mxu0 %v283
    %1573 = vmatprep.subr.mxu0 0.0
    %1574 = vmatpush1.msra.mxu0 %v282
    %1575 = vmatprep.subr.mxu0 0.0
    %1576 = vmatpush1.msra.mxu0 %v281
    %1577 = vmatprep.subr.mxu0 0.0
    %1578 = vmatpush1.msra.mxu0 %v280
    %1579 = vmatprep.subr.mxu0 0.0
    %1580 = vmatpush1.msra.mxu0 %v279
    %1581 = vmatprep.subr.mxu0 0.0
    %1582 = vmatpush2.msra.mxu0 %v310
    %1583 = vmatprep.subr.mxu0 0.0
    %1584 = vmatpush2.msra.mxu0 %v309
    %1585 = vmatprep.subr.mxu0 0.0
    %1586 = vmatpush2.msra.mxu0 %v308
    %1587 = vmatprep.subr.mxu0 0.0
    %1588 = vmatpush2.msra.mxu0 %v307
    %1589 = vmatprep.subr.mxu0 0.0
    %1590 = vmatpush2.msra.mxu0 %v306
    %1591 = vmatprep.subr.mxu0 0.0
    %1592 = vmatpush2.msra.mxu0 %v305
    %1593 = vmatprep.subr.mxu0 0.0
    %1594 = vmatpush2.msra.mxu0 %v304
    %1595 = vmatprep.subr.mxu0 0.0
    %1596 = vmatpush2.msra.mxu0 %v303
    %1597 = vmatprep.subr.mxu0 0.0
    %1598 = vmatpush2.msra.mxu0 %v302
    %1599 = vmatprep.subr.mxu0 0.0
    %1600 = vmatpush2.msra.mxu0 %v301
    %1601 = vmatprep.subr.mxu0 0.0
    %1602 = vmatpush2.msra.mxu0 %v300
    %1603 = vmatprep.subr.mxu0 0.0
    %1604 = vmatpush2.msra.mxu0 %v299
    %1605 = vmatprep.subr.mxu0 0.0
    %1606 = vmatpush2.msra.mxu0 %v298
    %1607 = vmatprep.subr.mxu0 0.0
    %1608 = vmatpush2.msra.mxu0 %v297
    %1609 = vmatprep.subr.mxu0 0.0
    %1610 = vmatpush2.msra.mxu0 %v296
    %1611 = vmatprep.subr.mxu0 0.0
    %1612 = vmatpush2.msra.mxu0 %v295
    %1613 = vmatprep.mubr.f32.mxu0 %v1521
    %1614 = vmatmul.mubr.f32.gmra.mxu0 %v1533
    %v1615 = vpop.f32.mrf.mxu0
    %v1616 = vadd.f32 %v332, %v1615
    %v1617 = vpop.f32.mrf.mxu0
    %1618 = vmatprep.mubr.f32.mxu0 %v1522
    %1619 = vmatmul.mubr.f32.gmra.mxu0 %v1534
    %v1620 = vpop.f32.mrf.mxu0
    %v1621 = vadd.f32 %v332, %v1620
    %v1622 = vpop.f32.mrf.mxu0
    %1623 = vmatprep.mubr.f32.mxu0 %v1523
    %1624 = vmatmul.mubr.f32.gmra.mxu0 %v1535
    %v1625 = vpop.f32.mrf.mxu0
    %v1626 = vadd.f32 %v332, %v1625
    %v1627 = vpop.f32.mrf.mxu0
    %1628 = vmatprep.mubr.f32.mxu0 %v1524
    %1629 = vmatmul.mubr.f32.gmra.mxu0 %v1536
    %v1630 = vpop.f32.mrf.mxu0
    %v1631 = vadd.f32 %v332, %v1630
    %v1632 = vpop.f32.mrf.mxu0
    %1633 = vdwg.mxu0
    %1634 = vmatprep.subr.mxu0 0.0
    %1635 = vmatpush1.msra.mxu0 %v326
    %1636 = vmatprep.subr.mxu0 0.0
    %1637 = vmatpush1.msra.mxu0 %v325
    %1638 = vmatprep.subr.mxu0 0.0
    %1639 = vmatpush1.msra.mxu0 %v324
    %1640 = vmatprep.subr.mxu0 0.0
    %1641 = vmatpush1.msra.mxu0 %v323
    %1642 = vmatprep.subr.mxu0 0.0
    %1643 = vmatpush1.msra.mxu0 %v322
    %1644 = vmatprep.subr.mxu0 0.0
    %1645 = vmatpush1.msra.mxu0 %v321
    %1646 = vmatprep.subr.mxu0 0.0
    %1647 = vmatpush1.msra.mxu0 %v320
    %1648 = vmatprep.subr.mxu0 0.0
    %1649 = vmatpush1.msra.mxu0 %v319
    %1650 = vmatprep.subr.mxu0 0.0
    %1651 = vmatpush1.msra.mxu0 %v318
    %1652 = vmatprep.subr.mxu0 0.0
    %1653 = vmatpush1.msra.mxu0 %v317
    %1654 = vmatprep.subr.mxu0 0.0
    %1655 = vmatpush1.msra.mxu0 %v316
    %1656 = vmatprep.subr.mxu0 0.0
    %1657 = vmatpush1.msra.mxu0 %v315
    %1658 = vmatprep.subr.mxu0 0.0
    %1659 = vmatpush1.msra.mxu0 %v314
    %1660 = vmatprep.subr.mxu0 0.0
    %1661 = vmatpush1.msra.mxu0 %v313
    %1662 = vmatprep.subr.mxu0 0.0
    %1663 = vmatpush1.msra.mxu0 %v312
    %1664 = vmatprep.subr.mxu0 0.0
    %1665 = vmatpush1.msra.mxu0 %v311
    %1666 = vmatprep.subr.mxu0 0.0
    %1667 = vmatpush2.msra.mxu0 0.0
    %1668 = vmatprep.subr.mxu0 0.0
    %1669 = vmatpush2.msra.mxu0 0.0
    %1670 = vmatprep.subr.mxu0 0.0
    %1671 = vmatpush2.msra.mxu0 0.0
    %1672 = vmatprep.subr.mxu0 0.0
    %1673 = vmatpush2.msra.mxu0 0.0
    %1674 = vmatprep.subr.mxu0 0.0
    %1675 = vmatpush2.msra.mxu0 0.0
    %1676 = vmatprep.subr.mxu0 0.0
    %1677 = vmatpush2.msra.mxu0 0.0
    %1678 = vmatprep.subr.mxu0 0.0
    %1679 = vmatpush2.msra.mxu0 0.0
    %1680 = vmatprep.subr.mxu0 0.0
    %1681 = vmatpush2.msra.mxu0 0.0
    %1682 = vmatprep.subr.mxu0 0.0
    %1683 = vmatpush2.msra.mxu0 0.0
    %1684 = vmatprep.subr.mxu0 0.0
    %1685 = vmatpush2.msra.mxu0 0.0
    %1686 = vmatprep.subr.mxu0 0.0
    %1687 = vmatpush2.msra.mxu0 0.0
    %1688 = vmatprep.subr.mxu0 0.0
    %1689 = vmatpush2.msra.mxu0 0.0
    %1690 = vmatprep.subr.mxu0 0.0
    %1691 = vmatpush2.msra.mxu0 0.0
    %1692 = vmatprep.subr.mxu0 0.0
    %1693 = vmatpush2.msra.mxu0 0.0
    %1694 = vmatprep.subr.mxu0 0.0
    %1695 = vmatpush2.msra.mxu0 0.0
    %1696 = vmatprep.subr.mxu0 0.0
    %1697 = vmatpush2.msra.mxu0 0.0
    %1698 = vmatprep.mubr.f32.mxu0 0.0
    %1699 = vmatmul.mubr.f32.gmra.mxu0 %v1545
    %v1700 = vpop.f32.mrf.mxu0
    %v1701 = vadd.f32 %v1616, %v1700
    %v1702 = vpop.f32.mrf.mxu0
    %1703 = vmatprep.mubr.f32.mxu0 0.0
    %1704 = vmatmul.mubr.f32.gmra.mxu0 %v1546
    %v1705 = vpop.f32.mrf.mxu0
    %v1706 = vadd.f32 %v1621, %v1705
    %v1707 = vpop.f32.mrf.mxu0
    %1708 = vmatprep.mubr.f32.mxu0 0.0
    %1709 = vmatmul.mubr.f32.gmra.mxu0 %v1547
    %v1710 = vpop.f32.mrf.mxu0
    %v1711 = vadd.f32 %v1626, %v1710
    %v1712 = vpop.f32.mrf.mxu0
    %1713 = vmatprep.mubr.f32.mxu0 0.0
    %1714 = vmatmul.mubr.f32.gmra.mxu0 %v1548
    %v1715 = vpop.f32.mrf.mxu0
    %v1716 = vadd.f32 %v1631, %v1715
    %v1717 = vpop.f32.mrf.mxu0
    %1718 = vdwg.mxu0
    %vm1719 = vcmp.ge.f32.partialorder %v1701, 0.0
    %vm1720 = vcmp.ge.f32.partialorder %v1706, 0.0
    %vm1721 = vcmp.ge.f32.partialorder %v1711, 0.0
    %vm1722 = vcmp.ge.f32.partialorder %v1716, 0.0
    %v1723 = vmul.f32 %v596, %v1701
    %v1724 = vmul.f32 %v596, %v1706
    %v1725 = vmul.f32 %v596, %v1711
    %v1726 = vmul.f32 %v596, %v1716
    %v1727 = vsel %vm1719, %v1701, %v1723
    %v1728 = vsel %vm1720, %v1706, %v1724
    %v1729 = vsel %vm1721, %v1711, %v1725
    %v1730 = vsel %vm1722, %v1716, %v1726
    %v1731 = vrot.slane %v1727, 7
    %v1732 = vrot.slane %v1728, 7
    %v1733 = vrot.slane %v1729, 7
    %v1734 = vrot.slane %v1730, 7
    %v1735 = vsel %vm217, %v1733, %v1734
    %v1736 = vsel %vm217, %v1732, %v1733
    %v1737 = vsel %vm217, %v1731, %v1732
    %v1738 = vsel %vm217, %v1734, %v1731
    %v1739 = vsel %vm181, 0.0, %v1738
    %v1740 = vsel %vm182, 0.0, %v1737
    %v1741 = vsel %vm183, 0.0, %v1736
    %v1742 = vsel %vm184, 0.0, %v1735
    %v1743 = vrot.slane %v1727, 1
    %v1744 = vrot.slane %v1728, 1
    %v1745 = vrot.slane %v1729, 1
    %v1746 = vrot.slane %v1730, 1
    %v1747 = vsel %vm254, %v1745, %v1746
    %v1748 = vsel %vm254, %v1744, %v1745
    %v1749 = vsel %vm254, %v1743, %v1744
    %v1750 = vsel %vm254, %v1746, %v1743
    %v1751 = vsel %vm193, 0.0, %v1749
    %v1752 = vsel %vm194, 0.0, %v1748
    %v1753 = vsel %vm195, 0.0, %v1747
    %v1754 = vsel %vm196, 0.0, %v1750
    %1755 = vmatprep.subr.mxu0 0.0
    %1756 = vmatpush1.msra.mxu0 %v708
    %1757 = vmatprep.subr.mxu0 0.0
    %1758 = vmatpush1.msra.mxu0 %v707
    %1759 = vmatprep.subr.mxu0 0.0
    %1760 = vmatpush1.msra.mxu0 %v706
    %1761 = vmatprep.subr.mxu0 0.0
    %1762 = vmatpush1.msra.mxu0 %v705
    %1763 = vmatprep.subr.mxu0 0.0
    %1764 = vmatpush1.msra.mxu0 %v704
    %1765 = vmatprep.subr.mxu0 0.0
    %1766 = vmatpush1.msra.mxu0 %v703
    %1767 = vmatprep.subr.mxu0 0.0
    %1768 = vmatpush1.msra.mxu0 %v702
    %1769 = vmatprep.subr.mxu0 0.0
    %1770 = vmatpush1.msra.mxu0 %v701
    %1771 = vmatprep.subr.mxu0 0.0
    %1772 = vmatpush1.msra.mxu0 %v700
    %1773 = vmatprep.subr.mxu0 0.0
    %1774 = vmatpush1.msra.mxu0 %v699
    %1775 = vmatprep.subr.mxu0 0.0
    %1776 = vmatpush1.msra.mxu0 %v698
    %1777 = vmatprep.subr.mxu0 0.0
    %1778 = vmatpush1.msra.mxu0 %v697
    %1779 = vmatprep.subr.mxu0 0.0
    %1780 = vmatpush1.msra.mxu0 %v696
    %1781 = vmatprep.subr.mxu0 0.0
    %1782 = vmatpush1.msra.mxu0 %v695
    %1783 = vmatprep.subr.mxu0 0.0
    %1784 = vmatpush1.msra.mxu0 %v694
    %1785 = vmatprep.subr.mxu0 0.0
    %1786 = vmatpush1.msra.mxu0 %v693
    %1787 = vmatprep.subr.mxu0 0.0
    %1788 = vmatpush2.msra.mxu0 %v724
    %1789 = vmatprep.subr.mxu0 0.0
    %1790 = vmatpush2.msra.mxu0 %v723
    %1791 = vmatprep.subr.mxu0 0.0
    %1792 = vmatpush2.msra.mxu0 %v722
    %1793 = vmatprep.subr.mxu0 0.0
    %1794 = vmatpush2.msra.mxu0 %v721
    %1795 = vmatprep.subr.mxu0 0.0
    %1796 = vmatpush2.msra.mxu0 %v720
    %1797 = vmatprep.subr.mxu0 0.0
    %1798 = vmatpush2.msra.mxu0 %v719
    %1799 = vmatprep.subr.mxu0 0.0
    %1800 = vmatpush2.msra.mxu0 %v718
    %1801 = vmatprep.subr.mxu0 0.0
    %1802 = vmatpush2.msra.mxu0 %v717
    %1803 = vmatprep.subr.mxu0 0.0
    %1804 = vmatpush2.msra.mxu0 %v716
    %1805 = vmatprep.subr.mxu0 0.0
    %1806 = vmatpush2.msra.mxu0 %v715
    %1807 = vmatprep.subr.mxu0 0.0
    %1808 = vmatpush2.msra.mxu0 %v714
    %1809 = vmatprep.subr.mxu0 0.0
    %1810 = vmatpush2.msra.mxu0 %v713
    %1811 = vmatprep.subr.mxu0 0.0
    %1812 = vmatpush2.msra.mxu0 %v712
    %1813 = vmatprep.subr.mxu0 0.0
    %1814 = vmatpush2.msra.mxu0 %v711
    %1815 = vmatprep.subr.mxu0 0.0
    %1816 = vmatpush2.msra.mxu0 %v710
    %1817 = vmatprep.subr.mxu0 0.0
    %1818 = vmatpush2.msra.mxu0 %v709
    %1819 = vmatprep.mubr.f32.mxu0 %v1727
    %1820 = vmatmul.mubr.f32.gmra.mxu0 %v1739
    %v1821 = vpop.f32.mrf.mxu0
    %v1822 = vadd.f32 %v746, %v1821
    %v1823 = vpop.f32.mrf.mxu0
    %1824 = vmatprep.mubr.f32.mxu0 %v1728
    %1825 = vmatmul.mubr.f32.gmra.mxu0 %v1740
    %v1826 = vpop.f32.mrf.mxu0
    %v1827 = vadd.f32 %v746, %v1826
    %v1828 = vpop.f32.mrf.mxu0
    %1829 = vmatprep.mubr.f32.mxu0 %v1729
    %1830 = vmatmul.mubr.f32.gmra.mxu0 %v1741
    %v1831 = vpop.f32.mrf.mxu0
    %v1832 = vadd.f32 %v746, %v1831
    %v1833 = vpop.f32.mrf.mxu0
    %1834 = vmatprep.mubr.f32.mxu0 %v1730
    %1835 = vmatmul.mubr.f32.gmra.mxu0 %v1742
    %v1836 = vpop.f32.mrf.mxu0
    %v1837 = vadd.f32 %v746, %v1836
    %v1838 = vpop.f32.mrf.mxu0
    %1839 = vdwg.mxu0
    %1840 = vmatprep.subr.mxu0 0.0
    %1841 = vmatpush1.msra.mxu0 %v740
    %1842 = vmatprep.subr.mxu0 0.0
    %1843 = vmatpush1.msra.mxu0 %v739
    %1844 = vmatprep.subr.mxu0 0.0
    %1845 = vmatpush1.msra.mxu0 %v738
    %1846 = vmatprep.subr.mxu0 0.0
    %1847 = vmatpush1.msra.mxu0 %v737
    %1848 = vmatprep.subr.mxu0 0.0
    %1849 = vmatpush1.msra.mxu0 %v736
    %1850 = vmatprep.subr.mxu0 0.0
    %1851 = vmatpush1.msra.mxu0 %v735
    %1852 = vmatprep.subr.mxu0 0.0
    %1853 = vmatpush1.msra.mxu0 %v734
    %1854 = vmatprep.subr.mxu0 0.0
    %1855 = vmatpush1.msra.mxu0 %v733
    %1856 = vmatprep.subr.mxu0 0.0
    %1857 = vmatpush1.msra.mxu0 %v732
    %1858 = vmatprep.subr.mxu0 0.0
    %1859 = vmatpush1.msra.mxu0 %v731
    %1860 = vmatprep.subr.mxu0 0.0
    %1861 = vmatpush1.msra.mxu0 %v730
    %1862 = vmatprep.subr.mxu0 0.0
    %1863 = vmatpush1.msra.mxu0 %v729
    %1864 = vmatprep.subr.mxu0 0.0
    %1865 = vmatpush1.msra.mxu0 %v728
    %1866 = vmatprep.subr.mxu0 0.0
    %1867 = vmatpush1.msra.mxu0 %v727
    %1868 = vmatprep.subr.mxu0 0.0
    %1869 = vmatpush1.msra.mxu0 %v726
    %1870 = vmatprep.subr.mxu0 0.0
    %1871 = vmatpush1.msra.mxu0 %v725
    %1872 = vmatprep.subr.mxu0 0.0
    %1873 = vmatpush2.msra.mxu0 0.0
    %1874 = vmatprep.subr.mxu0 0.0
    %1875 = vmatpush2.msra.mxu0 0.0
    %1876 = vmatprep.subr.mxu0 0.0
    %1877 = vmatpush2.msra.mxu0 0.0
    %1878 = vmatprep.subr.mxu0 0.0
    %1879 = vmatpush2.msra.mxu0 0.0
    %1880 = vmatprep.subr.mxu0 0.0
    %1881 = vmatpush2.msra.mxu0 0.0
    %1882 = vmatprep.subr.mxu0 0.0
    %1883 = vmatpush2.msra.mxu0 0.0
    %1884 = vmatprep.subr.mxu0 0.0
    %1885 = vmatpush2.msra.mxu0 0.0
    %1886 = vmatprep.subr.mxu0 0.0
    %1887 = vmatpush2.msra.mxu0 0.0
    %1888 = vmatprep.subr.mxu0 0.0
    %1889 = vmatpush2.msra.mxu0 0.0
    %1890 = vmatprep.subr.mxu0 0.0
    %1891 = vmatpush2.msra.mxu0 0.0
    %1892 = vmatprep.subr.mxu0 0.0
    %1893 = vmatpush2.msra.mxu0 0.0
    %1894 = vmatprep.subr.mxu0 0.0
    %1895 = vmatpush2.msra.mxu0 0.0
    %1896 = vmatprep.subr.mxu0 0.0
    %1897 = vmatpush2.msra.mxu0 0.0
    %1898 = vmatprep.subr.mxu0 0.0
    %1899 = vmatpush2.msra.mxu0 0.0
    %1900 = vmatprep.subr.mxu0 0.0
    %1901 = vmatpush2.msra.mxu0 0.0
    %1902 = vmatprep.subr.mxu0 0.0
    %1903 = vmatpush2.msra.mxu0 0.0
    %1904 = vmatprep.mubr.f32.mxu0 0.0
    %1905 = vmatmul.mubr.f32.gmra.mxu0 %v1751
    %v1906 = vpop.f32.mrf.mxu0
    %v1907 = vadd.f32 %v1822, %v1906
    %v1908 = vpop.f32.mrf.mxu0
    %1909 = vmatprep.mubr.f32.mxu0 0.0
    %1910 = vmatmul.mubr.f32.gmra.mxu0 %v1752
    %v1911 = vpop.f32.mrf.mxu0
    %v1912 = vadd.f32 %v1827, %v1911
    %v1913 = vpop.f32.mrf.mxu0
    %1914 = vmatprep.mubr.f32.mxu0 0.0
    %1915 = vmatmul.mubr.f32.gmra.mxu0 %v1753
    %v1916 = vpop.f32.mrf.mxu0
    %v1917 = vadd.f32 %v1832, %v1916
    %v1918 = vpop.f32.mrf.mxu0
    %1919 = vmatprep.mubr.f32.mxu0 0.0
    %1920 = vmatmul.mubr.f32.gmra.mxu0 %v1754
    %v1921 = vpop.f32.mrf.mxu0
    %v1922 = vadd.f32 %v1837, %v1921
    %v1923 = vpop.f32.mrf.mxu0
    %1924 = vdwg.mxu0
    %vm1925 = vcmp.ge.f32.partialorder %v1907, 0.0
    %vm1926 = vcmp.ge.f32.partialorder %v1912, 0.0
    %vm1927 = vcmp.ge.f32.partialorder %v1917, 0.0
    %vm1928 = vcmp.ge.f32.partialorder %v1922, 0.0
    %v1929 = vmul.f32 %v1010, %v1907
    %v1930 = vmul.f32 %v1010, %v1912
    %v1931 = vmul.f32 %v1010, %v1917
    %v1932 = vmul.f32 %v1010, %v1922
    %v1933 = vsel %vm1925, %v1907, %v1929
    %v1934 = vsel %vm1926, %v1912, %v1930
    %v1935 = vsel %vm1927, %v1917, %v1931
    %v1936 = vsel %vm1928, %v1922, %v1932
    %v1937 = vadd.f32 %v1521, %v1933
    %v1938 = vadd.f32 %v1522, %v1934
    %v1939 = vadd.f32 %v1523, %v1935
    %v1940 = vadd.f32 %v1524, %v1936
    %v1941 = vrot.slane %v1937, 7
    %v1942 = vrot.slane %v1938, 7
    %v1943 = vrot.slane %v1939, 7
    %v1944 = vrot.slane %v1940, 7
    %v1945 = vsel %vm217, %v1943, %v1944
    %v1946 = vsel %vm217, %v1942, %v1943
    %v1947 = vsel %vm217, %v1941, %v1942
    %v1948 = vsel %vm217, %v1944, %v1941
    %v1949 = vsel %vm181, 0.0, %v1948
    %v1950 = vsel %vm182, 0.0, %v1947
    %v1951 = vsel %vm183, 0.0, %v1946
    %v1952 = vsel %vm184, 0.0, %v1945
    %v1953 = vrot.slane %v1937, 1
    %v1954 = vrot.slane %v1938, 1
    %v1955 = vrot.slane %v1939, 1
    %v1956 = vrot.slane %v1940, 1
    %v1957 = vsel %vm254, %v1955, %v1956
    %v1958 = vsel %vm254, %v1954, %v1955
    %v1959 = vsel %vm254, %v1953, %v1954
    %v1960 = vsel %vm254, %v1956, %v1953
    %v1961 = vsel %vm193, 0.0, %v1959
    %v1962 = vsel %vm194, 0.0, %v1958
    %v1963 = vsel %vm195, 0.0, %v1957
    %v1964 = vsel %vm196, 0.0, %v1960
    %1965 = vmatprep.subr.mxu0 0.0
    %1966 = vmatpush1.msra.mxu0 %v1134
    %1967 = vmatprep.subr.mxu0 0.0
    %1968 = vmatpush1.msra.mxu0 %v1133
    %1969 = vmatprep.subr.mxu0 0.0
    %1970 = vmatpush1.msra.mxu0 %v1132
    %1971 = vmatprep.subr.mxu0 0.0
    %1972 = vmatpush1.msra.mxu0 %v1131
    %1973 = vmatprep.subr.mxu0 0.0
    %1974 = vmatpush1.msra.mxu0 %v1130
    %1975 = vmatprep.subr.mxu0 0.0
    %1976 = vmatpush1.msra.mxu0 %v1129
    %1977 = vmatprep.subr.mxu0 0.0
    %1978 = vmatpush1.msra.mxu0 %v1128
    %1979 = vmatprep.subr.mxu0 0.0
    %1980 = vmatpush1.msra.mxu0 %v1127
    %1981 = vmatprep.subr.mxu0 0.0
    %1982 = vmatpush1.msra.mxu0 %v1126
    %1983 = vmatprep.subr.mxu0 0.0
    %1984 = vmatpush1.msra.mxu0 %v1125
    %1985 = vmatprep.subr.mxu0 0.0
    %1986 = vmatpush1.msra.mxu0 %v1124
    %1987 = vmatprep.subr.mxu0 0.0
    %1988 = vmatpush1.msra.mxu0 %v1123
    %1989 = vmatprep.subr.mxu0 0.0
    %1990 = vmatpush1.msra.mxu0 %v1122
    %1991 = vmatprep.subr.mxu0 0.0
    %1992 = vmatpush1.msra.mxu0 %v1121
    %1993 = vmatprep.subr.mxu0 0.0
    %1994 = vmatpush1.msra.mxu0 %v1120
    %1995 = vmatprep.subr.mxu0 0.0
    %1996 = vmatpush1.msra.mxu0 %v1119
    %1997 = vmatprep.subr.mxu0 0.0
    %1998 = vmatpush2.msra.mxu0 %v1150
    %1999 = vmatprep.subr.mxu0 0.0
    %2000 = vmatpush2.msra.mxu0 %v1149
    %2001 = vmatprep.subr.mxu0 0.0
    %2002 = vmatpush2.msra.mxu0 %v1148
    %2003 = vmatprep.subr.mxu0 0.0
    %2004 = vmatpush2.msra.mxu0 %v1147
    %2005 = vmatprep.subr.mxu0 0.0
    %2006 = vmatpush2.msra.mxu0 %v1146
    %2007 = vmatprep.subr.mxu0 0.0
    %2008 = vmatpush2.msra.mxu0 %v1145
    %2009 = vmatprep.subr.mxu0 0.0
    %2010 = vmatpush2.msra.mxu0 %v1144
    %2011 = vmatprep.subr.mxu0 0.0
    %2012 = vmatpush2.msra.mxu0 %v1143
    %2013 = vmatprep.subr.mxu0 0.0
    %2014 = vmatpush2.msra.mxu0 %v1142
    %2015 = vmatprep.subr.mxu0 0.0
    %2016 = vmatpush2.msra.mxu0 %v1141
    %2017 = vmatprep.subr.mxu0 0.0
    %2018 = vmatpush2.msra.mxu0 %v1140
    %2019 = vmatprep.subr.mxu0 0.0
    %2020 = vmatpush2.msra.mxu0 %v1139
    %2021 = vmatprep.subr.mxu0 0.0
    %2022 = vmatpush2.msra.mxu0 %v1138
    %2023 = vmatprep.subr.mxu0 0.0
    %2024 = vmatpush2.msra.mxu0 %v1137
    %2025 = vmatprep.subr.mxu0 0.0
    %2026 = vmatpush2.msra.mxu0 %v1136
    %2027 = vmatprep.subr.mxu0 0.0
    %2028 = vmatpush2.msra.mxu0 %v1135
    %2029 = vmatprep.mubr.f32.mxu0 %v1937
    %2030 = vmatmul.mubr.f32.gmra.mxu0 %v1949
    %v2031 = vpop.f32.mrf.mxu0
    %v2032 = vadd.f32 %v1172, %v2031
    %v2033 = vpop.f32.mrf.mxu0
    %2034 = vmatprep.mubr.f32.mxu0 %v1938
    %2035 = vmatmul.mubr.f32.gmra.mxu0 %v1950
    %v2036 = vpop.f32.mrf.mxu0
    %v2037 = vadd.f32 %v1172, %v2036
    %v2038 = vpop.f32.mrf.mxu0
    %2039 = vmatprep.mubr.f32.mxu0 %v1939
    %2040 = vmatmul.mubr.f32.gmra.mxu0 %v1951
    %v2041 = vpop.f32.mrf.mxu0
    %v2042 = vadd.f32 %v1172, %v2041
    %v2043 = vpop.f32.mrf.mxu0
    %2044 = vmatprep.mubr.f32.mxu0 %v1940
    %2045 = vmatmul.mubr.f32.gmra.mxu0 %v1952
    %v2046 = vpop.f32.mrf.mxu0
    %v2047 = vadd.f32 %v1172, %v2046
    %v2048 = vpop.f32.mrf.mxu0
    %2049 = vdwg.mxu0
    %2050 = vmatprep.subr.mxu0 0.0
    %2051 = vmatpush1.msra.mxu0 %v1166
    %2052 = vmatprep.subr.mxu0 0.0
    %2053 = vmatpush1.msra.mxu0 %v1165
    %2054 = vmatprep.subr.mxu0 0.0
    %2055 = vmatpush1.msra.mxu0 %v1164
    %2056 = vmatprep.subr.mxu0 0.0
    %2057 = vmatpush1.msra.mxu0 %v1163
    %2058 = vmatprep.subr.mxu0 0.0
    %2059 = vmatpush1.msra.mxu0 %v1162
    %2060 = vmatprep.subr.mxu0 0.0
    %2061 = vmatpush1.msra.mxu0 %v1161
    %2062 = vmatprep.subr.mxu0 0.0
    %2063 = vmatpush1.msra.mxu0 %v1160
    %2064 = vmatprep.subr.mxu0 0.0
    %2065 = vmatpush1.msra.mxu0 %v1159
    %2066 = vmatprep.subr.mxu0 0.0
    %2067 = vmatpush1.msra.mxu0 %v1158
    %2068 = vmatprep.subr.mxu0 0.0
    %2069 = vmatpush1.msra.mxu0 %v1157
    %2070 = vmatprep.subr.mxu0 0.0
    %2071 = vmatpush1.msra.mxu0 %v1156
    %2072 = vmatprep.subr.mxu0 0.0
    %2073 = vmatpush1.msra.mxu0 %v1155
    %2074 = vmatprep.subr.mxu0 0.0
    %2075 = vmatpush1.msra.mxu0 %v1154
    %2076 = vmatprep.subr.mxu0 0.0
    %2077 = vmatpush1.msra.mxu0 %v1153
    %2078 = vmatprep.subr.mxu0 0.0
    %2079 = vmatpush1.msra.mxu0 %v1152
    %2080 = vmatprep.subr.mxu0 0.0
    %2081 = vmatpush1.msra.mxu0 %v1151
    %2082 = vmatprep.subr.mxu0 0.0
    %2083 = vmatpush2.msra.mxu0 0.0
    %2084 = vmatprep.subr.mxu0 0.0
    %2085 = vmatpush2.msra.mxu0 0.0
    %2086 = vmatprep.subr.mxu0 0.0
    %2087 = vmatpush2.msra.mxu0 0.0
    %2088 = vmatprep.subr.mxu0 0.0
    %2089 = vmatpush2.msra.mxu0 0.0
    %2090 = vmatprep.subr.mxu0 0.0
    %2091 = vmatpush2.msra.mxu0 0.0
    %2092 = vmatprep.subr.mxu0 0.0
    %2093 = vmatpush2.msra.mxu0 0.0
    %2094 = vmatprep.subr.mxu0 0.0
    %2095 = vmatpush2.msra.mxu0 0.0
    %2096 = vmatprep.subr.mxu0 0.0
    %2097 = vmatpush2.msra.mxu0 0.0
    %2098 = vmatprep.subr.mxu0 0.0
    %2099 = vmatpush2.msra.mxu0 0.0
    %2100 = vmatprep.subr.mxu0 0.0
    %2101 = vmatpush2.msra.mxu0 0.0
    %2102 = vmatprep.subr.mxu0 0.0
    %2103 = vmatpush2.msra.mxu0 0.0
    %2104 = vmatprep.subr.mxu0 0.0
    %2105 = vmatpush2.msra.mxu0 0.0
    %2106 = vmatprep.subr.mxu0 0.0
    %2107 = vmatpush2.msra.mxu0 0.0
    %2108 = vmatprep.subr.mxu0 0.0
    %2109 = vmatpush2.msra.mxu0 0.0
    %2110 = vmatprep.subr.mxu0 0.0
    %2111 = vmatpush2.msra.mxu0 0.0
    %2112 = vmatprep.subr.mxu0 0.0
    %2113 = vmatpush2.msra.mxu0 0.0
    %2114 = vmatprep.mubr.f32.mxu0 0.0
    %2115 = vmatmul.mubr.f32.gmra.mxu0 %v1961
    %v2116 = vpop.f32.mrf.mxu0
    %v2117 = vadd.f32 %v2032, %v2116
    %v2118 = vpop.f32.mrf.mxu0
    %2119 = vmatprep.mubr.f32.mxu0 0.0
    %2120 = vmatmul.mubr.f32.gmra.mxu0 %v1962
    %v2121 = vpop.f32.mrf.mxu0
    %v2122 = vadd.f32 %v2037, %v2121
    %v2123 = vpop.f32.mrf.mxu0
    %2124 = vmatprep.mubr.f32.mxu0 0.0
    %2125 = vmatmul.mubr.f32.gmra.mxu0 %v1963
    %v2126 = vpop.f32.mrf.mxu0
    %v2127 = vadd.f32 %v2042, %v2126
    %v2128 = vpop.f32.mrf.mxu0
    %2129 = vmatprep.mubr.f32.mxu0 0.0
    %2130 = vmatmul.mubr.f32.gmra.mxu0 %v1964
    %v2131 = vpop.f32.mrf.mxu0
    %v2132 = vadd.f32 %v2047, %v2131
    %v2133 = vpop.f32.mrf.mxu0
    %2134 = vdwg.mxu0
    %vm2135 = vcmp.ge.f32.partialorder %v2117, 0.0
    %vm2136 = vcmp.ge.f32.partialorder %v2122, 0.0
    %vm2137 = vcmp.ge.f32.partialorder %v2127, 0.0
    %vm2138 = vcmp.ge.f32.partialorder %v2132, 0.0
    %v2139 = vmul.f32 %v1424, %v2117
    %v2140 = vmul.f32 %v1424, %v2122
    %v2141 = vmul.f32 %v1424, %v2127
    %v2142 = vmul.f32 %v1424, %v2132
    %v2143 = vsel %vm2135, %v2117, %v2139
    %v2144 = vsel %vm2136, %v2122, %v2140
    %v2145 = vsel %vm2137, %v2127, %v2141
    %v2146 = vsel %vm2138, %v2132, %v2142
    %v2147 = vld [vmem:[%s2] sm:$0xff]
    %v2148 = vld [vmem:[%s2 + $0x8] sm:$0xff]
    %v2149 = vld [vmem:[%s2 + $0x10] sm:$0xff]
    %v2150 = vld [vmem:[%s2 + $0x18] sm:$0xff]
    %2152 = vset.pattern.permute.xlu0 0
    %2153 = vperm.xlu0 %2152, %v2147
    %v2154 = vpop.permute.xlu0 %2153
    %2157 = vset.pattern.permute.xlu0 0
    %2158 = vperm.xlu0 %2157, %v2148
    %v2159 = vpop.permute.xlu0 %2158
    %2162 = vset.pattern.permute.xlu0 0
    %2163 = vperm.xlu0 %2162, %v2149
    %v2164 = vpop.permute.xlu0 %2163
    %2167 = vset.pattern.permute.xlu0 0
    %2168 = vperm.xlu0 %2167, %v2150
    %v2169 = vpop.permute.xlu0 %2168
    %v2171 = vmul.f32 %v2154, %v2143
    %v2172 = vmul.f32 %v2159, %v2144
    %v2173 = vmul.f32 %v2164, %v2145
    %v2174 = vmul.f32 %v2169, %v2146
    %v2175 = vadd.f32 %v1497, %v2171
    %v2176 = vadd.f32 %v1498, %v2172
    %v2177 = vadd.f32 %v1499, %v2173
    %v2178 = vadd.f32 %v1500, %v2174
    %2179 = vst.msk [vmem:[#allocation7] sm:$0xff] %vm143, %v2175
    %2180 = vst.msk [vmem:[#allocation7 + $0x8] sm:$0xff] %vm143, %v2176
    %2181 = vst.msk [vmem:[#allocation7 + $0x10] sm:$0xff] %vm143, %v2177
    %2182 = vst.msk [vmem:[#allocation7 + $0x18] sm:$0xff] %vm143, %v2178
    // Predicated region
    $region50: #{tpu_custom_call.1} parent=1 // pred_check
      _
    $region51: #{tpu_custom_call.1} parent=1 // pred_check_branch
      %2184 = sbr.rel (0) target = $region53
    $region52: #{tpu_custom_call.1} parent=1 // pred_region
      %s2186 = ssub.s32 512, 512
      %2187 = vsyncadd [#allocation4], %s2186
      %s2188 = sshll.u32 [#allocation7], 4
      %s2189 = int_to_ptr.vmem [resolvable:$true] %s2188
      %2194 = dma.vmem_to_hbm [thread:$0]  %s2189, 512, %s10, [#allocation4], 128, 128, 8
    $region53: #{tpu_custom_call.1} parent=1 // pred_fallthru
      _
    // Predicated region
    $region54: #{tpu_custom_call.1} parent=1 // pred_check
      _
    $region55: #{tpu_custom_call.1} parent=1 // pred_check_branch
      %2196 = sbr.rel (0) target = $region57
    $region56: #{tpu_custom_call.1} parent=1 // pred_region
      %2197 = dma.done [#allocation4], 512
    $region57: #{tpu_custom_call.1} parent=1 // pred_fallthru
      _
    %2198 = vsyncpa [#allocation3], 1
    %2199 = vsyncpa [#allocation4], 1
    %2200 = vsyncpa [#allocation5], 1

</llo_original>
